<compile_context>
chip_gen: v7x
topology: tpu7x:2x2x1
jax: 0.10.0
libtpu: 0.0.40
codegen_flags: <defaults>
</compile_context>

<pallas_src>
import jax
import jax.numpy as jnp
from jax.experimental import pallas as pl
from jax.experimental.pallas import tpu as pltpu


def _round_up(n, m):
    return ((n + m - 1) // m) * m


def _cva_kernel(xm_ref, x_ref, wq_ref, bq_ref, wv_ref, bv_ref, wo_ref, bo_ref, o_ref):
    Bt, tS, E = x_ref.shape

    x2 = x_ref[...].reshape(Bt * tS, E)          # (Bt*tS, E)  bf16 (tall LHS for MXU)
    xm = xm_ref[...].reshape(Bt, E)              # (Bt, E)     bf16

    # Composite vector via linearity: mean_s(x @ Wv + bv) = mean_s(x) @ Wv + bv.
    cv = jnp.dot(xm, wv_ref[...], preferred_element_type=jnp.float32) + bv_ref[...]   # (Bt, E) f32

    # q projection.
    q = jnp.dot(x2, wq_ref[...], preferred_element_type=jnp.float32) + bq_ref[...]    # (Bt*tS, E) f32

    # Broadcast-multiply (f32) then output projection on the MXU (bf16 in, f32 acc).
    h = (q.reshape(Bt, tS, E) * cv[:, None, :]).reshape(Bt * tS, E).astype(wo_ref.dtype)
    out = jnp.dot(h, wo_ref[...], preferred_element_type=jnp.float32) + bo_ref[...]

    o_ref[...] = out.reshape(Bt, tS, E).astype(o_ref.dtype)


def _choose_tiles(B, S_pad, E_pad, out_itemsize):
    """Pick (Bt, tS) so double-buffered activation tiles + weights fit ~48 MiB (v7x-safe)."""
    budget = 48 * 1024 * 1024
    weight_bytes = 2 * (3 * E_pad * E_pad * 2 + 3 * E_pad * 4)   # worst case: double-buffered
    avail = max(budget - weight_bytes, 4 * 1024 * 1024)
    per_row = 2 * E_pad * (2 + out_itemsize)                     # x(bf16)+out, double buffered
    max_rows = max(8, avail // per_row)

    tS = min(S_pad, (max_rows // 8) * 8)
    tS = max(8, tS)
    while S_pad % tS:
        tS -= 8

    Bt = 1
    if tS == S_pad:
        # Whole sequence fits in one tile: block batches for a taller MXU LHS,
        # but keep >= 2 parallel batch steps so both v7x TensorCores stay busy.
        while (B % (2 * Bt) == 0 and B // (2 * Bt) >= 2
               and 2 * Bt * tS < 256
               and 2 * Bt * tS * per_row <= avail):
            Bt *= 2
    return Bt, tS


def _vmem_limit_bytes(Bt, tS, E_pad, out_itemsize):
    weight_bytes = 2 * (3 * E_pad * E_pad * 2 + 3 * E_pad * 4)
    act_bytes = 2 * Bt * tS * E_pad * (2 + out_itemsize) + 2 * Bt * E_pad * 2
    need = weight_bytes + act_bytes
    return int(min(56 * 1024 * 1024, max(16 * 1024 * 1024, need + need // 4 + (1 << 20))))


def _build_cva_call(B, S_pad, E_pad, Bt, tS, out_dtype, vmem_limit, single_buffer_weights):
    def _const_spec(shape):
        kwargs = {}
        if single_buffer_weights:
            # Grid-invariant operands: no need for double buffering.
            kwargs["pipeline_mode"] = pl.Buffered(buffer_count=1)
        return pl.BlockSpec(shape, lambda b, s: (0, 0), **kwargs)

    grid_spec = pltpu.PrefetchScalarGridSpec(
        num_scalar_prefetch=0,
        grid=(B // Bt, S_pad // tS),
        in_specs=[
            pl.BlockSpec((Bt, 1, E_pad), lambda b, s: (b, 0, 0)),    # mean_s(x)
            pl.BlockSpec((Bt, tS, E_pad), lambda b, s: (b, s, 0)),   # x tile
            _const_spec((E_pad, E_pad)),                             # Wq
            _const_spec((1, E_pad)),                                 # bq
            _const_spec((E_pad, E_pad)),                             # Wv
            _const_spec((1, E_pad)),                                 # bv
            _const_spec((E_pad, E_pad)),                             # Wo
            _const_spec((1, E_pad)),                                 # bo
        ],
        out_specs=pl.BlockSpec((Bt, tS, E_pad), lambda b, s: (b, s, 0)),
    )
    return pl.pallas_call(
        _cva_kernel,
        out_shape=jax.ShapeDtypeStruct((B, S_pad, E_pad), out_dtype),
        grid_spec=grid_spec,
        compiler_params=pltpu.CompilerParams(
            dimension_semantics=("parallel", "parallel"),
            vmem_limit_bytes=vmem_limit,
        ),
    )


def composite_vector_attention(x, w_qv, b_qv, w_out, b_out):
    """x: (B, S, E). w_qv: (2E, E), b_qv: (2E,), w_out: (E, E), b_out: (E,)
    (PyTorch nn.Linear parameter layout)."""
    B, S, E = x.shape
    out_dtype = x.dtype
    out_itemsize = jnp.dtype(out_dtype).itemsize

    E_pad = _round_up(E, 128)   # lane-dense last dim (multiple of 128)
    S_pad = _round_up(S, 8)     # sublane-aligned sequence tiles

    # Tiny XLA reduce outside the kernel: mean over the sequence axis of x.
    # (The Wv matmul that turns this into the composite vector stays in-kernel.)
    x_mean = jnp.mean(x.astype(jnp.float32), axis=1, keepdims=True)   # (B, 1, E)

    # PyTorch nn.Linear stores W as (out, in); pre-transpose to (in, out).
    wq = w_qv[:E, :].T
    wv = w_qv[E:, :].T
    wo = w_out.T
    bq = b_qv[:E].reshape(1, E)
    bv = b_qv[E:].reshape(1, E)
    bo = b_out.reshape(1, E)

    pad_e = E_pad - E
    pad_s = S_pad - S
    pad2 = lambda a: jnp.pad(a, ((0, pad_e), (0, pad_e)))
    pad1 = lambda a: jnp.pad(a, ((0, 0), (0, pad_e)))

    # bf16 for the MXU (activations + weights); biases stay f32.
    x_p = jnp.pad(x, ((0, 0), (0, pad_s), (0, pad_e))).astype(jnp.bfloat16)
    xm_p = jnp.pad(x_mean, ((0, 0), (0, 0), (0, pad_e))).astype(jnp.bfloat16)
    wq_p = pad2(wq).astype(jnp.bfloat16)
    wv_p = pad2(wv).astype(jnp.bfloat16)
    wo_p = pad2(wo).astype(jnp.bfloat16)
    bq_p = pad1(bq).astype(jnp.float32)
    bv_p = pad1(bv).astype(jnp.float32)
    bo_p = pad1(bo).astype(jnp.float32)

    Bt, tS = _choose_tiles(B, S_pad, E_pad, out_itemsize)
    vmem_limit = _vmem_limit_bytes(Bt, tS, E_pad, out_itemsize)

    args = (xm_p, x_p, wq_p, bq_p, wv_p, bv_p, wo_p, bo_p)
    try:
        out = jax.block_until_ready(
            _build_cva_call(B, S_pad, E_pad, Bt, tS, out_dtype, vmem_limit, True)(*args))
    except Exception:
        # Installed JAX rejected single-buffered weights; fall back to defaults.
        out = _build_cva_call(B, S_pad, E_pad, Bt, tS, out_dtype, vmem_limit, False)(*args)

    return out[:, :S, :E]


def _reference(x, w_qv, b_qv, w_out, b_out):
    """Pure-JAX f32 reference matching the PyTorch forward (mask=None)."""
    E = x.shape[-1]
    qv = jnp.einsum("bse,oe->bso", x, w_qv) + b_qv
    q, v = qv[..., :E], qv[..., E:]
    cv = jnp.mean(v, axis=1, keepdims=True)
    return jnp.einsum("bse,oe->bso", q * cv, w_out) + b_out


if __name__ == "__main__":
    B, S, E = 2, 8, 32

    key = jax.random.PRNGKey(0)
    kx, kw1, kb1, kw2, kb2 = jax.random.split(key, 5)

    x = jax.random.normal(kx, (B, S, E), dtype=jnp.float32)
    # Deterministic parameter init (PyTorch nn.Linear shapes: (out, in) / (out,)).
    w_qv = jax.random.normal(kw1, (2 * E, E), dtype=jnp.float32) * 0.1
    b_qv = jax.random.normal(kb1, (2 * E,), dtype=jnp.float32) * 0.1
    w_out = jax.random.normal(kw2, (E, E), dtype=jnp.float32) * 0.1
    b_out = jax.random.normal(kb2, (E,), dtype=jnp.float32) * 0.1

    out = composite_vector_attention(x, w_qv, b_qv, w_out, b_out)
    out = jax.block_until_ready(out)

    ref = _reference(x, w_qv, b_qv, w_out, b_out)
    assert out.shape == (B, S, E)
    # bf16 MXU inputs with f32 accumulation -> loosened tolerance vs f32 reference.
    assert jnp.allclose(out, ref, atol=2e-2, rtol=2e-2), "mismatch vs reference"

    print("KERNEL_OK")
</pallas_src>

<mosaic_0001>
module attributes {stable_mosaic.version = 11 : i64} {
  func.func @_cva_kernel(%arg0: i32, %arg1: i32, %arg2: memref<1x1x128xbf16, #tpu.memory_space<vmem>>, %arg3: memref<1x8x128xbf16, #tpu.memory_space<vmem>>, %arg4: memref<128x128xbf16, #tpu.memory_space<vmem>>, %arg5: memref<1x128xf32, #tpu.memory_space<vmem>>, %arg6: memref<128x128xbf16, #tpu.memory_space<vmem>>, %arg7: memref<1x128xf32, #tpu.memory_space<vmem>>, %arg8: memref<128x128xbf16, #tpu.memory_space<vmem>>, %arg9: memref<1x128xf32, #tpu.memory_space<vmem>>, %arg10: memref<1x8x128xf32, #tpu.memory_space<vmem>>) attributes {dimension_semantics = [#tpu.dimension_semantics<parallel>, #tpu.dimension_semantics<parallel>], iteration_bounds = array<i64: 2, 1>, scalar_prefetch = 0 : i64, scratch_operands = 0 : i64, tpu.core_type = #tpu.core_type<tc>, window_params = [{transform_indices = @transform_0, window_bounds = array<i64: 1, 1, 128>}, {transform_indices = @transform_1, window_bounds = array<i64: 1, 8, 128>}, {pipeline_mode = #tpu.pipeline_mode<synchronous>, transform_indices = @transform_2, window_bounds = array<i64: 128, 128>}, {pipeline_mode = #tpu.pipeline_mode<synchronous>, transform_indices = @transform_3, window_bounds = array<i64: 1, 128>}, {pipeline_mode = #tpu.pipeline_mode<synchronous>, transform_indices = @transform_4, window_bounds = array<i64: 128, 128>}, {pipeline_mode = #tpu.pipeline_mode<synchronous>, transform_indices = @transform_5, window_bounds = array<i64: 1, 128>}, {pipeline_mode = #tpu.pipeline_mode<synchronous>, transform_indices = @transform_6, window_bounds = array<i64: 128, 128>}, {pipeline_mode = #tpu.pipeline_mode<synchronous>, transform_indices = @transform_7, window_bounds = array<i64: 1, 128>}, {transform_indices = @transform_8, window_bounds = array<i64: 1, 8, 128>}]} {
    %c0 = arith.constant 0 : index
    %c0_0 = arith.constant 0 : index
    %c0_1 = arith.constant 0 : index
    %0 = vector.load %arg3[%c0, %c0_0, %c0_1] : memref<1x8x128xbf16, #tpu.memory_space<vmem>>, vector<1x8x128xbf16>
    %1 = vector.shape_cast %0 : vector<1x8x128xbf16> to vector<8x128xbf16>
    %c0_2 = arith.constant 0 : index
    %c0_3 = arith.constant 0 : index
    %c0_4 = arith.constant 0 : index
    %2 = vector.load %arg2[%c0_2, %c0_3, %c0_4] : memref<1x1x128xbf16, #tpu.memory_space<vmem>>, vector<1x1x128xbf16>
    %3 = vector.shape_cast %2 : vector<1x1x128xbf16> to vector<1x128xbf16>
    %c0_5 = arith.constant 0 : index
    %c0_6 = arith.constant 0 : index
    %4 = vector.load %arg6[%c0_5, %c0_6] : memref<128x128xbf16, #tpu.memory_space<vmem>>, vector<128x128xbf16>
    %cst = arith.constant dense<0.000000e+00> : vector<1x128xf32>
    %5 = tpu.matmul %3, %4, %cst {dimension_numbers = #tpu.dot_dimension_numbers<[1], [0], [0], [1], [0, 0, 1, 1], [], []>} : vector<1x128xbf16>, vector<128x128xbf16>, vector<1x128xf32> -> vector<1x128xf32>
    %c0_7 = arith.constant 0 : index
    %c0_8 = arith.constant 0 : index
    %6 = vector.load %arg7[%c0_7, %c0_8] : memref<1x128xf32, #tpu.memory_space<vmem>>, vector<1x128xf32>
    %7 = arith.addf %5, %6 : vector<1x128xf32>
    %c0_9 = arith.constant 0 : index
    %c0_10 = arith.constant 0 : index
    %8 = vector.load %arg4[%c0_9, %c0_10] : memref<128x128xbf16, #tpu.memory_space<vmem>>, vector<128x128xbf16>
    %cst_11 = arith.constant dense<0.000000e+00> : vector<8x128xf32>
    %9 = tpu.matmul %1, %8, %cst_11 {dimension_numbers = #tpu.dot_dimension_numbers<[1], [0], [0], [1], [0, 0, 1, 1], [], []>} : vector<8x128xbf16>, vector<128x128xbf16>, vector<8x128xf32> -> vector<8x128xf32>
    %c0_12 = arith.constant 0 : index
    %c0_13 = arith.constant 0 : index
    %10 = vector.load %arg5[%c0_12, %c0_13] : memref<1x128xf32, #tpu.memory_space<vmem>>, vector<1x128xf32>
    %11 = vector.broadcast %10 : vector<1x128xf32> to vector<8x128xf32>
    %12 = arith.addf %9, %11 : vector<8x128xf32>
    %13 = vector.shape_cast %12 : vector<8x128xf32> to vector<1x8x128xf32>
    %14 = vector.shape_cast %7 : vector<1x128xf32> to vector<1x1x128xf32>
    %15 = vector.broadcast %14 : vector<1x1x128xf32> to vector<1x8x128xf32>
    %16 = arith.mulf %13, %15 : vector<1x8x128xf32>
    %17 = vector.shape_cast %16 : vector<1x8x128xf32> to vector<8x128xf32>
    %18 = arith.truncf %17 : vector<8x128xf32> to vector<8x128xbf16>
    %c0_14 = arith.constant 0 : index
    %c0_15 = arith.constant 0 : index
    %19 = vector.load %arg8[%c0_14, %c0_15] : memref<128x128xbf16, #tpu.memory_space<vmem>>, vector<128x128xbf16>
    %cst_16 = arith.constant dense<0.000000e+00> : vector<8x128xf32>
    %20 = tpu.matmul %18, %19, %cst_16 {dimension_numbers = #tpu.dot_dimension_numbers<[1], [0], [0], [1], [0, 0, 1, 1], [], []>} : vector<8x128xbf16>, vector<128x128xbf16>, vector<8x128xf32> -> vector<8x128xf32>
    %c0_17 = arith.constant 0 : index
    %c0_18 = arith.constant 0 : index
    %21 = vector.load %arg9[%c0_17, %c0_18] : memref<1x128xf32, #tpu.memory_space<vmem>>, vector<1x128xf32>
    %22 = vector.broadcast %21 : vector<1x128xf32> to vector<8x128xf32>
    %23 = arith.addf %20, %22 : vector<8x128xf32>
    %24 = vector.shape_cast %23 : vector<8x128xf32> to vector<1x8x128xf32>
    %c0_19 = arith.constant 0 : index
    %c0_20 = arith.constant 0 : index
    %c0_21 = arith.constant 0 : index
    %25 = vector.load %arg10[%c0_19, %c0_20, %c0_21] : memref<1x8x128xf32, #tpu.memory_space<vmem>>, vector<1x8x128xf32>
    tpu.vector_store %arg10[%c0_19, %c0_20, %c0_21], %24 {strides = array<i32>} : memref<1x8x128xf32, #tpu.memory_space<vmem>>, vector<1x8x128xf32>,
    return
  }
  func.func @transform_0(%arg0: i32, %arg1: i32) -> (i32, i32, i32) {
    %c0_i32 = arith.constant 0 : i32
    %c0_i32_0 = arith.constant 0 : i32
    %c0_i32_1 = arith.constant 0 : i32
    return %arg0, %c0_i32, %c0_i32_0 : i32, i32, i32
  }
  func.func @transform_1(%arg0: i32, %arg1: i32) -> (i32, i32, i32) {
    %c0_i32 = arith.constant 0 : i32
    %c0_i32_0 = arith.constant 0 : i32
    return %arg0, %arg1, %c0_i32 : i32, i32, i32
  }
  func.func @transform_2(%arg0: i32, %arg1: i32) -> (i32, i32) {
    %c0_i32 = arith.constant 0 : i32
    %c0_i32_0 = arith.constant 0 : i32
    %c0_i32_1 = arith.constant 0 : i32
    return %c0_i32, %c0_i32_0 : i32, i32
  }
  func.func @transform_3(%arg0: i32, %arg1: i32) -> (i32, i32) {
    %c0_i32 = arith.constant 0 : i32
    %c0_i32_0 = arith.constant 0 : i32
    %c0_i32_1 = arith.constant 0 : i32
    return %c0_i32, %c0_i32_0 : i32, i32
  }
  func.func @transform_4(%arg0: i32, %arg1: i32) -> (i32, i32) {
    %c0_i32 = arith.constant 0 : i32
    %c0_i32_0 = arith.constant 0 : i32
    %c0_i32_1 = arith.constant 0 : i32
    return %c0_i32, %c0_i32_0 : i32, i32
  }
  func.func @transform_5(%arg0: i32, %arg1: i32) -> (i32, i32) {
    %c0_i32 = arith.constant 0 : i32
    %c0_i32_0 = arith.constant 0 : i32
    %c0_i32_1 = arith.constant 0 : i32
    return %c0_i32, %c0_i32_0 : i32, i32
  }
  func.func @transform_6(%arg0: i32, %arg1: i32) -> (i32, i32) {
    %c0_i32 = arith.constant 0 : i32
    %c0_i32_0 = arith.constant 0 : i32
    %c0_i32_1 = arith.constant 0 : i32
    return %c0_i32, %c0_i32_0 : i32, i32
  }
  func.func @transform_7(%arg0: i32, %arg1: i32) -> (i32, i32) {
    %c0_i32 = arith.constant 0 : i32
    %c0_i32_0 = arith.constant 0 : i32
    %c0_i32_1 = arith.constant 0 : i32
    return %c0_i32, %c0_i32_0 : i32, i32
  }
  func.func @transform_8(%arg0: i32, %arg1: i32) -> (i32, i32, i32) {
    %c0_i32 = arith.constant 0 : i32
    %c0_i32_0 = arith.constant 0 : i32
    return %arg0, %arg1, %c0_i32 : i32, i32, i32
  }
}

module attributes {stable_mosaic.version = 11 : i64} {
  func.func @_cva_kernel(%arg0: i32, %arg1: i32, %arg2: memref<1x1x128xbf16, #tpu.memory_space<vmem>>, %arg3: memref<1x8x128xbf16, #tpu.memory_space<vmem>>, %arg4: memref<128x128xbf16, #tpu.memory_space<vmem>>, %arg5: memref<1x128xf32, #tpu.memory_space<vmem>>, %arg6: memref<128x128xbf16, #tpu.memory_space<vmem>>, %arg7: memref<1x128xf32, #tpu.memory_space<vmem>>, %arg8: memref<128x128xbf16, #tpu.memory_space<vmem>>, %arg9: memref<1x128xf32, #tpu.memory_space<vmem>>, %arg10: memref<1x8x128xf32, #tpu.memory_space<vmem>>) attributes {dimension_semantics = [#tpu.dimension_semantics<parallel>, #tpu.dimension_semantics<parallel>], iteration_bounds = array<i64: 2, 1>, scalar_prefetch = 0 : i64, scratch_operands = 0 : i64, tpu.core_type = #tpu.core_type<tc>, window_params = [{transform_indices = @transform_0, window_bounds = array<i64: 1, 1, 128>}, {transform_indices = @transform_1, window_bounds = array<i64: 1, 8, 128>}, {pipeline_mode = #tpu.pipeline_mode<synchronous>, transform_indices = @transform_2, window_bounds = array<i64: 128, 128>}, {pipeline_mode = #tpu.pipeline_mode<synchronous>, transform_indices = @transform_3, window_bounds = array<i64: 1, 128>}, {pipeline_mode = #tpu.pipeline_mode<synchronous>, transform_indices = @transform_4, window_bounds = array<i64: 128, 128>}, {pipeline_mode = #tpu.pipeline_mode<synchronous>, transform_indices = @transform_5, window_bounds = array<i64: 1, 128>}, {pipeline_mode = #tpu.pipeline_mode<synchronous>, transform_indices = @transform_6, window_bounds = array<i64: 128, 128>}, {pipeline_mode = #tpu.pipeline_mode<synchronous>, transform_indices = @transform_7, window_bounds = array<i64: 1, 128>}, {transform_indices = @transform_8, window_bounds = array<i64: 1, 8, 128>}]} {
    %c0 = arith.constant 0 : index
    %c0_0 = arith.constant 0 : index
    %c0_1 = arith.constant 0 : index
    %0 = vector.load %arg3[%c0, %c0_0, %c0_1] : memref<1x8x128xbf16, #tpu.memory_space<vmem>>, vector<1x8x128xbf16>
    %1 = vector.shape_cast %0 : vector<1x8x128xbf16> to vector<8x128xbf16>
    %c0_2 = arith.constant 0 : index
    %c0_3 = arith.constant 0 : index
    %c0_4 = arith.constant 0 : index
    %2 = vector.load %arg2[%c0_2, %c0_3, %c0_4] : memref<1x1x128xbf16, #tpu.memory_space<vmem>>, vector<1x1x128xbf16>
    %3 = vector.shape_cast %2 : vector<1x1x128xbf16> to vector<1x128xbf16>
    %c0_5 = arith.constant 0 : index
    %c0_6 = arith.constant 0 : index
    %4 = vector.load %arg6[%c0_5, %c0_6] : memref<128x128xbf16, #tpu.memory_space<vmem>>, vector<128x128xbf16>
    %cst = arith.constant dense<0.000000e+00> : vector<1x128xf32>
    %5 = tpu.matmul %3, %4, %cst {dimension_numbers = #tpu.dot_dimension_numbers<[1], [0], [0], [1], [0, 0, 1, 1], [], []>} : vector<1x128xbf16>, vector<128x128xbf16>, vector<1x128xf32> -> vector<1x128xf32>
    %c0_7 = arith.constant 0 : index
    %c0_8 = arith.constant 0 : index
    %6 = vector.load %arg7[%c0_7, %c0_8] : memref<1x128xf32, #tpu.memory_space<vmem>>, vector<1x128xf32>
    %7 = arith.addf %5, %6 : vector<1x128xf32>
    %c0_9 = arith.constant 0 : index
    %c0_10 = arith.constant 0 : index
    %8 = vector.load %arg4[%c0_9, %c0_10] : memref<128x128xbf16, #tpu.memory_space<vmem>>, vector<128x128xbf16>
    %cst_11 = arith.constant dense<0.000000e+00> : vector<8x128xf32>
    %9 = tpu.matmul %1, %8, %cst_11 {dimension_numbers = #tpu.dot_dimension_numbers<[1], [0], [0], [1], [0, 0, 1, 1], [], []>} : vector<8x128xbf16>, vector<128x128xbf16>, vector<8x128xf32> -> vector<8x128xf32>
    %c0_12 = arith.constant 0 : index
    %c0_13 = arith.constant 0 : index
    %10 = vector.load %arg5[%c0_12, %c0_13] : memref<1x128xf32, #tpu.memory_space<vmem>>, vector<1x128xf32>
    %11 = vector.broadcast %10 : vector<1x128xf32> to vector<8x128xf32>
    %12 = arith.addf %9, %11 : vector<8x128xf32>
    %13 = vector.shape_cast %12 : vector<8x128xf32> to vector<1x8x128xf32>
    %14 = vector.shape_cast %7 : vector<1x128xf32> to vector<1x1x128xf32>
    %15 = vector.broadcast %14 : vector<1x1x128xf32> to vector<1x8x128xf32>
    %16 = arith.mulf %13, %15 : vector<1x8x128xf32>
    %17 = vector.shape_cast %16 : vector<1x8x128xf32> to vector<8x128xf32>
    %18 = arith.truncf %17 : vector<8x128xf32> to vector<8x128xbf16>
    %c0_14 = arith.constant 0 : index
    %c0_15 = arith.constant 0 : index
    %19 = vector.load %arg8[%c0_14, %c0_15] : memref<128x128xbf16, #tpu.memory_space<vmem>>, vector<128x128xbf16>
    %cst_16 = arith.constant dense<0.000000e+00> : vector<8x128xf32>
    %20 = tpu.matmul %18, %19, %cst_16 {dimension_numbers = #tpu.dot_dimension_numbers<[1], [0], [0], [1], [0, 0, 1, 1], [], []>} : vector<8x128xbf16>, vector<128x128xbf16>, vector<8x128xf32> -> vector<8x128xf32>
    %c0_17 = arith.constant 0 : index
    %c0_18 = arith.constant 0 : index
    %21 = vector.load %arg9[%c0_17, %c0_18] : memref<1x128xf32, #tpu.memory_space<vmem>>, vector<1x128xf32>
    %22 = vector.broadcast %21 : vector<1x128xf32> to vector<8x128xf32>
    %23 = arith.addf %20, %22 : vector<8x128xf32>
    %24 = vector.shape_cast %23 : vector<8x128xf32> to vector<1x8x128xf32>
    %c0_19 = arith.constant 0 : index
    %c0_20 = arith.constant 0 : index
    %c0_21 = arith.constant 0 : index
    %25 = vector.load %arg10[%c0_19, %c0_20, %c0_21] : memref<1x8x128xf32, #tpu.memory_space<vmem>>, vector<1x8x128xf32>
    tpu.vector_store %arg10[%c0_19, %c0_20, %c0_21], %24 {strides = array<i32>} : memref<1x8x128xf32, #tpu.memory_space<vmem>>, vector<1x8x128xf32>,
    return
  }
  func.func @transform_0(%arg0: i32, %arg1: i32) -> (i32, i32, i32) {
    %c0_i32 = arith.constant 0 : i32
    %c0_i32_0 = arith.constant 0 : i32
    %c0_i32_1 = arith.constant 0 : i32
    return %arg0, %c0_i32, %c0_i32_0 : i32, i32, i32
  }
  func.func @transform_1(%arg0: i32, %arg1: i32) -> (i32, i32, i32) {
    %c0_i32 = arith.constant 0 : i32
    %c0_i32_0 = arith.constant 0 : i32
    return %arg0, %arg1, %c0_i32 : i32, i32, i32
  }
  func.func @transform_2(%arg0: i32, %arg1: i32) -> (i32, i32) {
    %c0_i32 = arith.constant 0 : i32
    %c0_i32_0 = arith.constant 0 : i32
    %c0_i32_1 = arith.constant 0 : i32
    return %c0_i32, %c0_i32_0 : i32, i32
  }
  func.func @transform_3(%arg0: i32, %arg1: i32) -> (i32, i32) {
    %c0_i32 = arith.constant 0 : i32
    %c0_i32_0 = arith.constant 0 : i32
    %c0_i32_1 = arith.constant 0 : i32
    return %c0_i32, %c0_i32_0 : i32, i32
  }
  func.func @transform_4(%arg0: i32, %arg1: i32) -> (i32, i32) {
    %c0_i32 = arith.constant 0 : i32
    %c0_i32_0 = arith.constant 0 : i32
    %c0_i32_1 = arith.constant 0 : i32
    return %c0_i32, %c0_i32_0 : i32, i32
  }
  func.func @transform_5(%arg0: i32, %arg1: i32) -> (i32, i32) {
    %c0_i32 = arith.constant 0 : i32
    %c0_i32_0 = arith.constant 0 : i32
    %c0_i32_1 = arith.constant 0 : i32
    return %c0_i32, %c0_i32_0 : i32, i32
  }
  func.func @transform_6(%arg0: i32, %arg1: i32) -> (i32, i32) {
    %c0_i32 = arith.constant 0 : i32
    %c0_i32_0 = arith.constant 0 : i32
    %c0_i32_1 = arith.constant 0 : i32
    return %c0_i32, %c0_i32_0 : i32, i32
  }
  func.func @transform_7(%arg0: i32, %arg1: i32) -> (i32, i32) {
    %c0_i32 = arith.constant 0 : i32
    %c0_i32_0 = arith.constant 0 : i32
    %c0_i32_1 = arith.constant 0 : i32
    return %c0_i32, %c0_i32_0 : i32, i32
  }
  func.func @transform_8(%arg0: i32, %arg1: i32) -> (i32, i32, i32) {
    %c0_i32 = arith.constant 0 : i32
    %c0_i32_0 = arith.constant 0 : i32
    return %arg0, %arg1, %c0_i32 : i32, i32, i32
  }
}

</mosaic_0001>

<llo_original>
// kernel: tpu_custom_call.1
$region0: #{tpu_custom_call.1}
  #allocation0 [shape = 'u32[]', space=smem, size = 0x4, offset = 0x4, fixed_abs, tag = 'smem constant byte address 0x4 - core index']
  #allocation1 [shape = 'u32[144,128]{1,0:T(1,128)}', space=vmem, size = 0x12000, scoped, tag = 'internal scratch']
  %s0 = inlined_call_operand.vmem [shape: bf16[2,1,128], index: 0, kind: input, shape index: {}]
  %s1 = inlined_call_operand.hbm [shape: bf16[2,8,128], index: 1, kind: input, shape index: {}]
  %s2 = inlined_call_operand.hbm [shape: bf16[128,128], index: 2, kind: input, shape index: {}]
  %s3 = inlined_call_operand.vmem [shape: f32[1,128], index: 3, kind: input, shape index: {}]
  %s4 = inlined_call_operand.hbm [shape: bf16[128,128], index: 4, kind: input, shape index: {}]
  %s5 = inlined_call_operand.vmem [shape: f32[1,128], index: 5, kind: input, shape index: {}]
  %s6 = inlined_call_operand.hbm [shape: bf16[128,128], index: 6, kind: input, shape index: {}]
  %s7 = inlined_call_operand.vmem [shape: f32[1,128], index: 7, kind: input, shape index: {}]
  %s8 = inlined_call_operand.hbm [shape: f32[2,8,128], index: 8, kind: output, shape index: {}]
  %s9 = sld [smem:[#allocation0]]
  $region81: #{tpu_custom_call.1} parent=0
    _
  %s11 = ssub.s32 1, %s9
  %s12 = scalar_select 0, %s11, %s9
  $region1: #{tpu_custom_call.1} parent=0
    #allocation2 [shape = 'u8[4096]{0}', space=vmem, size = 0x1000, scoped, tag = 'input window, operand 1']
    #allocation3 [shape = 's32[2]{0}', space=sflag, size = 0x8, scoped, tag = 'scoped memory for tpu_custom_call.1']
    #allocation4 [shape = 's32[2]{0}', space=sflag, size = 0x8, scoped, tag = 'scoped memory for tpu_custom_call.1']
    #allocation5 [shape = 'u8[32768]{0}', space=vmem, size = 0x8000, scoped, tag = 'input window, operand 2, single buffered']
    #allocation6 [shape = 's32[1]{0}', space=sflag, size = 0x4, scoped, tag = 'scoped memory for tpu_custom_call.1']
    #allocation7 [shape = 'u8[32768]{0}', space=vmem, size = 0x8000, scoped, tag = 'input window, operand 4, single buffered']
    #allocation8 [shape = 'u8[32768]{0}', space=vmem, size = 0x8000, scoped, tag = 'input window, operand 6, single buffered']
    #allocation9 [shape = 's32[1]{0}', space=sflag, size = 0x4, scoped, tag = 'scoped memory for tpu_custom_call.1']
    #allocation10 [shape = 'u8[8192]{0}', space=vmem, size = 0x2000, scoped, tag = 'output window, operand 0']
    %13 = vsyncpa [#allocation3], 0
    %s14 = scalar_lea.sflag [#allocation3], 1
    %15 = vsyncpa %s14, 0
    %16 = vsyncpa [#allocation6], 0
    %17 = vsyncpa [#allocation9], 0
    %18 = vsyncpa [#allocation4], 0
    %s19 = scalar_lea.sflag [#allocation4], 1
    %20 = vsyncpa %s19, 0
    loop: start=0, step=1, limit=4
    $region2: #{tpu_custom_call.1} parent=1 // loop_pre_header
      _
    $region3: #{tpu_custom_call.1} parent=1 // loop_header
      %s22 = sphi 0, %s26
      %p23 = scmp.ge.s32.totalorder %s22, 4
      %s29 = sphi 0, %s41
      %s30 = sphi 0, %s37
      %s31 = sphi 0, %s29
      %s32 = sphi 0, %s30
      %s33 = sphi 0, %s31
      %s34 = sphi 0, %s32
      %s44 = sphi 0, %s46
      %s47 = sphi 0, %s44
      %s48 = sphi 0, %s47
      %s64 = sphi 0, %s48
      %s72 = sphi 0, %s74
      %s75 = sphi 0, %s72
      %s76 = sphi 0, %s75
      %s92 = sphi 0, %s76
      %s96 = sphi 0, %s96
      %s98 = sphi 0, %s96
      %s99 = sphi 0, %s98
      %s113 = sphi 0, %s99
      %s117 = sphi 0, %s117
      %s119 = sphi 0, %s117
      %s120 = sphi 0, %s119
      %s134 = sphi 0, %s120
      %s138 = sphi 0, %s138
      %s140 = sphi 0, %s138
      %s141 = sphi 0, %s140
      %s155 = sphi 0, %s141
      %s159 = sphi 0, %s159
      %s161 = sphi 0, %s159
      %s162 = sphi 0, %s161
      %s176 = sphi 0, %s162
      %s180 = sphi 0, %s180
      %s182 = sphi 0, %s180
      %s183 = sphi 0, %s182
      %s197 = sphi 0, %s183
      %s201 = sphi 0, %s201
      %s203 = sphi 0, %s201
      %s204 = sphi 0, %s203
      %s218 = sphi 0, %s204
      %s226 = sphi 0, %s228
      %s229 = sphi 0, %s226
      %s230 = sphi 0, %s229
      %s246 = sphi 0, %s230
    $region4: #{tpu_custom_call.1} parent=1 // loop_header_branch
      %25 = sbr.rel (%p23) target = $region8
    $region5: #{tpu_custom_call.1} parent=1 // loop_body
      %s27 = ssub.s32 %s22, 1
      %s28 = ssub.s32 %s22, 2
      %s35 = sadd.s32 1, %s30
      %p36 = scmp.ge.s32.totalorder %s35, 1
      %s37 = scalar_select %p36, 0, %s35
      %s38 = sadd.s32 1, %s29
      %s39 = scalar_select %p36, %s38, %s29
      %p40 = scmp.ge.s32.totalorder %s39, 2
      %s41 = scalar_select %p40, 0, %s39
      %s42 = ssub.s32 %s29, %s41
      %p43 = scmp.eq.s32.totalorder %s42, 0
      %s45 = sadd.s32 %s44, 1
      %s46 = scalar_select %p43, %s44, %s45
      %p49 = pneg %p43
      %p50 = scmp.eq.s32.totalorder %s22, 1
      %p51 = por %p49, %p50
      %p52 = scmp.ne.s32.totalorder %s44, %s47
      %p53 = scmp.eq.s32.totalorder %s22, 0
      %p54 = por %p52, %p53
      %p55 = scmp.ne.s32.totalorder %s44, %s47
      %p56 = scmp.eq.s32.totalorder %s27, 1
      %p57 = por %p55, %p56
      %p58 = scmp.ne.s32.totalorder %s47, %s48
      %p59 = scmp.eq.s32.totalorder %s27, 0
      %p60 = por %p58, %p59
      %p61 = scmp.ne.s32.totalorder %s47, %s48
      %p62 = scmp.eq.s32.totalorder %s28, 1
      %p63 = por %p61, %p62
      %p65 = scmp.ne.s32.totalorder %s48, %s64
      %p66 = scmp.eq.s32.totalorder %s28, 0
      %p67 = por %p65, %p66
      %s68 = ssub.s32 %s29, %s41
      %s69 = ssub.s32 %s30, %s37
      %s70 = sor.u32 %s68, %s69
      %p71 = scmp.eq.s32.totalorder %s70, 0
      %s73 = sadd.s32 %s72, 1
      %s74 = scalar_select %p71, %s72, %s73
      %p77 = pneg %p71
      %p78 = scmp.eq.s32.totalorder %s22, 1
      %p79 = por %p77, %p78
      %p80 = scmp.ne.s32.totalorder %s72, %s75
      %p81 = scmp.eq.s32.totalorder %s22, 0
      %p82 = por %p80, %p81
      %p83 = scmp.ne.s32.totalorder %s72, %s75
      %p84 = scmp.eq.s32.totalorder %s27, 1
      %p85 = por %p83, %p84
      %p86 = scmp.ne.s32.totalorder %s75, %s76
      %p87 = scmp.eq.s32.totalorder %s27, 0
      %p88 = por %p86, %p87
      %p89 = scmp.ne.s32.totalorder %s75, %s76
      %p90 = scmp.eq.s32.totalorder %s28, 1
      %p91 = por %p89, %p90
      %p93 = scmp.ne.s32.totalorder %s76, %s92
      %p94 = scmp.eq.s32.totalorder %s28, 0
      %p95 = por %p93, %p94
      %s97 = sadd.s32 %s96, 1
      %p100 = scmp.eq.s32.totalorder %s22, 1
      %p101 = scmp.ne.s32.totalorder %s96, %s98
      %p102 = scmp.eq.s32.totalorder %s22, 0
      %p103 = por %p101, %p102
      %p104 = scmp.ne.s32.totalorder %s96, %s98
      %p105 = scmp.eq.s32.totalorder %s27, 1
      %p106 = por %p104, %p105
      %p107 = scmp.ne.s32.totalorder %s98, %s99
      %p108 = scmp.eq.s32.totalorder %s27, 0
      %p109 = por %p107, %p108
      %p110 = scmp.ne.s32.totalorder %s98, %s99
      %p111 = scmp.eq.s32.totalorder %s28, 1
      %p112 = por %p110, %p111
      %p114 = scmp.ne.s32.totalorder %s99, %s113
      %p115 = scmp.eq.s32.totalorder %s28, 0
      %p116 = por %p114, %p115
      %s118 = sadd.s32 %s117, 1
      %p121 = scmp.eq.s32.totalorder %s22, 1
      %p122 = scmp.ne.s32.totalorder %s117, %s119
      %p123 = scmp.eq.s32.totalorder %s22, 0
      %p124 = por %p122, %p123
      %p125 = scmp.ne.s32.totalorder %s117, %s119
      %p126 = scmp.eq.s32.totalorder %s27, 1
      %p127 = por %p125, %p126
      %p128 = scmp.ne.s32.totalorder %s119, %s120
      %p129 = scmp.eq.s32.totalorder %s27, 0
      %p130 = por %p128, %p129
      %p131 = scmp.ne.s32.totalorder %s119, %s120
      %p132 = scmp.eq.s32.totalorder %s28, 1
      %p133 = por %p131, %p132
      %p135 = scmp.ne.s32.totalorder %s120, %s134
      %p136 = scmp.eq.s32.totalorder %s28, 0
      %p137 = por %p135, %p136
      %s139 = sadd.s32 %s138, 1
      %p142 = scmp.eq.s32.totalorder %s22, 1
      %p143 = scmp.ne.s32.totalorder %s138, %s140
      %p144 = scmp.eq.s32.totalorder %s22, 0
      %p145 = por %p143, %p144
      %p146 = scmp.ne.s32.totalorder %s138, %s140
      %p147 = scmp.eq.s32.totalorder %s27, 1
      %p148 = por %p146, %p147
      %p149 = scmp.ne.s32.totalorder %s140, %s141
      %p150 = scmp.eq.s32.totalorder %s27, 0
      %p151 = por %p149, %p150
      %p152 = scmp.ne.s32.totalorder %s140, %s141
      %p153 = scmp.eq.s32.totalorder %s28, 1
      %p154 = por %p152, %p153
      %p156 = scmp.ne.s32.totalorder %s141, %s155
      %p157 = scmp.eq.s32.totalorder %s28, 0
      %p158 = por %p156, %p157
      %s160 = sadd.s32 %s159, 1
      %p163 = scmp.eq.s32.totalorder %s22, 1
      %p164 = scmp.ne.s32.totalorder %s159, %s161
      %p165 = scmp.eq.s32.totalorder %s22, 0
      %p166 = por %p164, %p165
      %p167 = scmp.ne.s32.totalorder %s159, %s161
      %p168 = scmp.eq.s32.totalorder %s27, 1
      %p169 = por %p167, %p168
      %p170 = scmp.ne.s32.totalorder %s161, %s162
      %p171 = scmp.eq.s32.totalorder %s27, 0
      %p172 = por %p170, %p171
      %p173 = scmp.ne.s32.totalorder %s161, %s162
      %p174 = scmp.eq.s32.totalorder %s28, 1
      %p175 = por %p173, %p174
      %p177 = scmp.ne.s32.totalorder %s162, %s176
      %p178 = scmp.eq.s32.totalorder %s28, 0
      %p179 = por %p177, %p178
      %s181 = sadd.s32 %s180, 1
      %p184 = scmp.eq.s32.totalorder %s22, 1
      %p185 = scmp.ne.s32.totalorder %s180, %s182
      %p186 = scmp.eq.s32.totalorder %s22, 0
      %p187 = por %p185, %p186
      %p188 = scmp.ne.s32.totalorder %s180, %s182
      %p189 = scmp.eq.s32.totalorder %s27, 1
      %p190 = por %p188, %p189
      %p191 = scmp.ne.s32.totalorder %s182, %s183
      %p192 = scmp.eq.s32.totalorder %s27, 0
      %p193 = por %p191, %p192
      %p194 = scmp.ne.s32.totalorder %s182, %s183
      %p195 = scmp.eq.s32.totalorder %s28, 1
      %p196 = por %p194, %p195
      %p198 = scmp.ne.s32.totalorder %s183, %s197
      %p199 = scmp.eq.s32.totalorder %s28, 0
      %p200 = por %p198, %p199
      %s202 = sadd.s32 %s201, 1
      %p205 = scmp.eq.s32.totalorder %s22, 1
      %p206 = scmp.ne.s32.totalorder %s201, %s203
      %p207 = scmp.eq.s32.totalorder %s22, 0
      %p208 = por %p206, %p207
      %p209 = scmp.ne.s32.totalorder %s201, %s203
      %p210 = scmp.eq.s32.totalorder %s27, 1
      %p211 = por %p209, %p210
      %p212 = scmp.ne.s32.totalorder %s203, %s204
      %p213 = scmp.eq.s32.totalorder %s27, 0
      %p214 = por %p212, %p213
      %p215 = scmp.ne.s32.totalorder %s203, %s204
      %p216 = scmp.eq.s32.totalorder %s28, 1
      %p217 = por %p215, %p216
      %p219 = scmp.ne.s32.totalorder %s204, %s218
      %p220 = scmp.eq.s32.totalorder %s28, 0
      %p221 = por %p219, %p220
      %s222 = ssub.s32 %s29, %s41
      %s223 = ssub.s32 %s30, %s37
      %s224 = sor.u32 %s222, %s223
      %p225 = scmp.eq.s32.totalorder %s224, 0
      %s227 = sadd.s32 %s226, 1
      %s228 = scalar_select %p225, %s226, %s227
      %p231 = pneg %p225
      %p232 = scmp.eq.s32.totalorder %s22, 1
      %p233 = por %p231, %p232
      %p234 = scmp.ne.s32.totalorder %s226, %s229
      %p235 = scmp.eq.s32.totalorder %s22, 0
      %p236 = por %p234, %p235
      %p237 = scmp.ne.s32.totalorder %s226, %s229
      %p238 = scmp.eq.s32.totalorder %s27, 1
      %p239 = por %p237, %p238
      %p240 = scmp.ne.s32.totalorder %s229, %s230
      %p241 = scmp.eq.s32.totalorder %s27, 0
      %p242 = por %p240, %p241
      %p243 = scmp.ne.s32.totalorder %s229, %s230
      %p244 = scmp.eq.s32.totalorder %s28, 1
      %p245 = por %p243, %p244
      %p247 = scmp.ne.s32.totalorder %s230, %s246
      %p248 = scmp.eq.s32.totalorder %s28, 0
      %p249 = por %p247, %p248
      %p250 = scmp.le.s32.totalorder 1, %s22
      %p251 = scmp.lt.s32.totalorder %s22, 3
      %p252 = pnand %p250, %p251
      %p253 = pneg %p252
      // Predicated region
      $region9: #{tpu_custom_call.1} parent=5 // pred_check
        _
      $region10: #{tpu_custom_call.1} parent=5 // pred_check_branch
        %255 = sbr.rel (%p252) target = $region12
      $region11: #{tpu_custom_call.1} parent=5 // pred_region
        %s256 = ssub.s32 %s22, 1
        // Predicated region
        $region13: #{tpu_custom_call.1} parent=11 // pred_check
          %p257 = pneg %p109
        $region14: #{tpu_custom_call.1} parent=11 // pred_check_branch
          %259 = sbr.rel (%p257) target = $region16
        $region15: #{tpu_custom_call.1} parent=11 // pred_region
          %s261 = ssub.s32 1024, 1024
          %262 = vsyncadd [#allocation6], %s261
          %s263 = sshll.u32 [#allocation5], 4
          %s264 = int_to_ptr.vmem [resolvable:$true] %s263
          %269 = dma.hbm_to_vmem [thread:$0]  %s2, 1024, %s264, [#allocation6], 64, 64, 4
        $region16: #{tpu_custom_call.1} parent=11 // pred_fallthru
          _
        // Predicated region
        $region17: #{tpu_custom_call.1} parent=11 // pred_check
          %p270 = pneg %p130
        $region18: #{tpu_custom_call.1} parent=11 // pred_check_branch
          %272 = sbr.rel (%p270) target = $region20
        $region19: #{tpu_custom_call.1} parent=11 // pred_region
          _
        $region20: #{tpu_custom_call.1} parent=11 // pred_fallthru
          _
        // Predicated region
        $region21: #{tpu_custom_call.1} parent=11 // pred_check
          %p273 = pneg %p151
        $region22: #{tpu_custom_call.1} parent=11 // pred_check_branch
          %275 = sbr.rel (%p273) target = $region24
        $region23: #{tpu_custom_call.1} parent=11 // pred_region
          %s277 = ssub.s32 1024, 1024
          %278 = vsyncadd [#allocation6], %s277
          %s279 = sshll.u32 [#allocation7], 4
          %s280 = int_to_ptr.vmem [resolvable:$true] %s279
          %285 = dma.hbm_to_vmem [thread:$0]  %s4, 1024, %s280, [#allocation6], 64, 64, 4
        $region24: #{tpu_custom_call.1} parent=11 // pred_fallthru
          _
        // Predicated region
        $region25: #{tpu_custom_call.1} parent=11 // pred_check
          %p286 = pneg %p172
        $region26: #{tpu_custom_call.1} parent=11 // pred_check_branch
          %288 = sbr.rel (%p286) target = $region28
        $region27: #{tpu_custom_call.1} parent=11 // pred_region
          _
        $region28: #{tpu_custom_call.1} parent=11 // pred_fallthru
          _
        // Predicated region
        $region29: #{tpu_custom_call.1} parent=11 // pred_check
          %p289 = pneg %p193
        $region30: #{tpu_custom_call.1} parent=11 // pred_check_branch
          %291 = sbr.rel (%p289) target = $region32
        $region31: #{tpu_custom_call.1} parent=11 // pred_region
          %s293 = ssub.s32 1024, 1024
          %294 = vsyncadd [#allocation9], %s293
          %s295 = sshll.u32 [#allocation8], 4
          %s296 = int_to_ptr.vmem [resolvable:$true] %s295
          %301 = dma.hbm_to_vmem [thread:$0]  %s6, 1024, %s296, [#allocation9], 64, 64, 4
        $region32: #{tpu_custom_call.1} parent=11 // pred_fallthru
          _
        // Predicated region
        $region33: #{tpu_custom_call.1} parent=11 // pred_check
          %p302 = pneg %p214
        $region34: #{tpu_custom_call.1} parent=11 // pred_check_branch
          %304 = sbr.rel (%p302) target = $region36
        $region35: #{tpu_custom_call.1} parent=11 // pred_region
          _
        $region36: #{tpu_custom_call.1} parent=11 // pred_fallthru
          _
      $region12: #{tpu_custom_call.1} parent=5 // pred_fallthru
        _
      %p305 = scmp.lt.s32.totalorder %s22, 2
      // Predicated region
      $region37: #{tpu_custom_call.1} parent=5 // pred_check
        %p306 = pneg %p305
      $region38: #{tpu_custom_call.1} parent=5 // pred_check_branch
        %308 = sbr.rel (%p306) target = $region40
      $region39: #{tpu_custom_call.1} parent=5 // pred_region
        // Predicated region
        $region41: #{tpu_custom_call.1} parent=39 // pred_check
          %p309 = pneg %p54
        $region42: #{tpu_custom_call.1} parent=39 // pred_check_branch
          %311 = sbr.rel (%p309) target = $region44
        $region43: #{tpu_custom_call.1} parent=39 // pred_region
          %p312 = scmp.lt.s32.totalorder %s29, 1
          %s313 = scalar_select %p312, %s29, 1
          %s314 = scalar_lea.vmem %s0, %s313
        $region44: #{tpu_custom_call.1} parent=39 // pred_fallthru
          _
        // Predicated region
        $region45: #{tpu_custom_call.1} parent=39 // pred_check
          %p315 = pneg %p82
        $region46: #{tpu_custom_call.1} parent=39 // pred_check_branch
          %317 = sbr.rel (%p315) target = $region48
        $region47: #{tpu_custom_call.1} parent=39 // pred_region
          %s318 = sand.u32 %s72, 1
          %s319 = scalar_lea.sflag [#allocation3], %s318
          %s320 = sand.u32 %s72, 1
          %s321 = smul.addr %s320, 4
          %s322 = scalar_lea.vmem [#allocation2], %s321
          %s324 = ssub.s32 64, 64
          %325 = vsyncadd %s319, %s324
          %s326 = sadd.s32 %s30, %s29
          %s327 = smul.addr %s326, 64
          %s328 = scalar_lea.hbm %s1, %s327
          %s330 = sshll.u32 %s322, 4
          %s331 = int_to_ptr.vmem [resolvable:$true] %s330
          %333 = dma.hbm_to_vmem [thread:$0]  %s328, 64, %s331, %s319
        $region48: #{tpu_custom_call.1} parent=39 // pred_fallthru
          _
      $region40: #{tpu_custom_call.1} parent=5 // pred_fallthru
        _
      %p334 = scmp.le.s32.totalorder 1, %s22
      %p335 = scmp.lt.s32.totalorder %s22, 3
      %p336 = pnand %p334, %p335
      %p337 = pneg %p336
      // Predicated region
      $region49: #{tpu_custom_call.1} parent=5 // pred_check
        _
      $region50: #{tpu_custom_call.1} parent=5 // pred_check_branch
        %339 = sbr.rel (%p336) target = $region52
      $region51: #{tpu_custom_call.1} parent=5 // pred_region
        %s340 = ssub.s32 %s22, 1
        %s341 = sand.u32 %s75, 1
        %s342 = scalar_lea.sflag [#allocation3], %s341
        %s343 = sand.u32 %s75, 1
        %s344 = smul.addr %s343, 4
        %s345 = scalar_lea.vmem [#allocation2], %s344
        // Predicated region
        $region53: #{tpu_custom_call.1} parent=51 // pred_check
          %p346 = pneg %p88
        $region54: #{tpu_custom_call.1} parent=51 // pred_check_branch
          %348 = sbr.rel (%p346) target = $region56
        $region55: #{tpu_custom_call.1} parent=51 // pred_region
          %349 = dma.done %s342, 64
        $region56: #{tpu_custom_call.1} parent=51 // pred_fallthru
          _
        // Predicated region
        $region57: #{tpu_custom_call.1} parent=51 // pred_check
          %p350 = pneg %p109
        $region58: #{tpu_custom_call.1} parent=51 // pred_check_branch
          %352 = sbr.rel (%p350) target = $region60
        $region59: #{tpu_custom_call.1} parent=51 // pred_region
          %353 = dma.done [#allocation6], 1024
        $region60: #{tpu_custom_call.1} parent=51 // pred_fallthru
          _
        // Predicated region
        $region61: #{tpu_custom_call.1} parent=51 // pred_check
          %p354 = pneg %p151
        $region62: #{tpu_custom_call.1} parent=51 // pred_check_branch
          %356 = sbr.rel (%p354) target = $region64
        $region63: #{tpu_custom_call.1} parent=51 // pred_region
          %357 = dma.done [#allocation6], 1024
        $region64: #{tpu_custom_call.1} parent=51 // pred_fallthru
          _
        // Predicated region
        $region65: #{tpu_custom_call.1} parent=51 // pred_check
          %p358 = pneg %p193
        $region66: #{tpu_custom_call.1} parent=51 // pred_check_branch
          %360 = sbr.rel (%p358) target = $region68
        $region67: #{tpu_custom_call.1} parent=51 // pred_region
          %361 = dma.done [#allocation9], 1024
        $region68: #{tpu_custom_call.1} parent=51 // pred_fallthru
          _
        %p362 = scmp.lt.s32.totalorder %s31, 1
        %s363 = scalar_select %p362, %s31, 1
        %s364 = scalar_lea.vmem %s0, %s363
        %p365 = pneg %p60
        %p366 = pneg %p57
        %s367 = sand.u32 %s75, 1
        %s368 = scalar_lea.sflag [#allocation3], %s367
        %s369 = sand.u32 %s75, 1
        %s370 = smul.addr %s369, 4
        %s371 = scalar_lea.vmem [#allocation2], %s370
        %p372 = pneg %p88
        %p373 = pneg %p85
        %p374 = pneg %p109
        %p375 = pneg %p106
        %p376 = pneg %p130
        %p377 = pneg %p127
        %p378 = pneg %p151
        %p379 = pneg %p148
        %p380 = pneg %p172
        %p381 = pneg %p169
        %p382 = pneg %p193
        %p383 = pneg %p190
        %p384 = pneg %p214
        %p385 = pneg %p211
        %p386 = pneg %p242
        %p387 = pneg %p239
        %s388 = sand.u32 %s229, 1
        %s389 = scalar_lea.sflag [#allocation4], %s388
        %s390 = sand.u32 %s229, 1
        %s391 = smul.addr %s390, 8
        %s392 = scalar_lea.vmem [#allocation10], %s391
        %p393 = scmp.lt.s32.totalorder %s31, 1
        %s394 = scalar_select %p393, %s31, 1
        %s395 = scalar_lea.vmem %s0, %s394
        %v397 = vld [vmem:[%s345] sm:$0xf]
        %v398 = vld [vmem:[%s395] sm:$0x1]
        %v399 = vld [vmem:[#allocation7] sm:$0xf]
        %v400 = vld [vmem:[#allocation7 + $0x4] sm:$0xf]
        %v401 = vld [vmem:[#allocation7 + $0x8] sm:$0xf]
        %v402 = vld [vmem:[#allocation7 + $0xc] sm:$0xf]
        %v403 = vld [vmem:[#allocation7 + $0x10] sm:$0xf]
        %v404 = vld [vmem:[#allocation7 + $0x14] sm:$0xf]
        %v405 = vld [vmem:[#allocation7 + $0x18] sm:$0xf]
        %v406 = vld [vmem:[#allocation7 + $0x1c] sm:$0xf]
        %v407 = vld [vmem:[#allocation7 + $0x20] sm:$0xf]
        %v408 = vld [vmem:[#allocation7 + $0x24] sm:$0xf]
        %v409 = vld [vmem:[#allocation7 + $0x28] sm:$0xf]
        %v410 = vld [vmem:[#allocation7 + $0x2c] sm:$0xf]
        %v411 = vld [vmem:[#allocation7 + $0x30] sm:$0xf]
        %v412 = vld [vmem:[#allocation7 + $0x34] sm:$0xf]
        %v413 = vld [vmem:[#allocation7 + $0x38] sm:$0xf]
        %v414 = vld [vmem:[#allocation7 + $0x3c] sm:$0xf]
        %v415 = vld [vmem:[%s5] sm:$0x1]
        %v432 = vunpack.c.l.b16 %v399
        %v433 = vunpack.c.l.b16 %v400
        %v434 = vunpack.c.l.b16 %v401
        %v435 = vunpack.c.l.b16 %v402
        %v436 = vunpack.c.l.b16 %v403
        %v437 = vunpack.c.l.b16 %v404
        %v438 = vunpack.c.l.b16 %v405
        %v439 = vunpack.c.l.b16 %v406
        %v440 = vunpack.c.l.b16 %v407
        %v441 = vunpack.c.l.b16 %v408
        %v442 = vunpack.c.l.b16 %v409
        %v443 = vunpack.c.l.b16 %v410
        %v444 = vunpack.c.l.b16 %v411
        %v445 = vunpack.c.l.b16 %v412
        %v446 = vunpack.c.l.b16 %v413
        %v447 = vunpack.c.l.b16 %v414
        %v448 = vpack.c.b16 %v433, %v432
        %v449 = vpack.c.b16 %v435, %v434
        %v450 = vpack.c.b16 %v437, %v436
        %v451 = vpack.c.b16 %v439, %v438
        %v452 = vpack.c.b16 %v441, %v440
        %v453 = vpack.c.b16 %v443, %v442
        %v454 = vpack.c.b16 %v445, %v444
        %v455 = vpack.c.b16 %v447, %v446
        %464 = vmatprep.subr.bf16.mxu0 0
        %465 = vmatpush1.bf16.msra.mxu0 %v448
        %466 = vmatprep.subr.bf16.mxu0 0
        %467 = vmatpush1.bf16.msra.mxu0 %v449
        %468 = vmatprep.subr.bf16.mxu0 0
        %469 = vmatpush1.bf16.msra.mxu0 %v450
        %470 = vmatprep.subr.bf16.mxu0 0
        %471 = vmatpush1.bf16.msra.mxu0 %v451
        %472 = vmatprep.subr.bf16.mxu0 0
        %473 = vmatpush1.bf16.msra.mxu0 %v452
        %474 = vmatprep.subr.bf16.mxu0 0
        %475 = vmatpush1.bf16.msra.mxu0 %v453
        %476 = vmatprep.subr.bf16.mxu0 0
        %477 = vmatpush1.bf16.msra.mxu0 %v454
        %478 = vmatprep.subr.bf16.mxu0 0
        %479 = vmatpush1.bf16.msra.mxu0 %v455
        %480 = vmatprep.subr.bf16.mxu0 0
        %481 = vmatpush1.bf16.msra.mxu0 0
        %482 = vmatprep.subr.bf16.mxu0 0
        %483 = vmatpush1.bf16.msra.mxu0 0
        %484 = vmatprep.subr.bf16.mxu0 0
        %485 = vmatpush1.bf16.msra.mxu0 0
        %486 = vmatprep.subr.bf16.mxu0 0
        %487 = vmatpush1.bf16.msra.mxu0 0
        %488 = vmatprep.subr.bf16.mxu0 0
        %489 = vmatpush1.bf16.msra.mxu0 0
        %490 = vmatprep.subr.bf16.mxu0 0
        %491 = vmatpush1.bf16.msra.mxu0 0
        %492 = vmatprep.subr.bf16.mxu0 0
        %493 = vmatpush1.bf16.msra.mxu0 0
        %494 = vmatprep.subr.bf16.mxu0 0
        %495 = vmatpush1.bf16.msra.mxu0 0
        %496 = vmatprep.mubr.bf16.mxu0 0
        %497 = vmatmul.mubr.bf16.gmra.mrb[0].mxu0 %v398
        %v498 = vpop.f32.mrb[0].mxu0
        %v499 = vadd.f32 %v415, %v498
        %v500 = vpop.f32.mrb[0].mxu0
        %v501 = vpop.f32.mrb[0].mxu0
        %v502 = vpop.f32.mrb[0].mxu0
        %503 = vdwg.mxu0
        %v504 = vld [vmem:[#allocation5] sm:$0xf]
        %v505 = vld [vmem:[#allocation5 + $0x4] sm:$0xf]
        %v506 = vld [vmem:[#allocation5 + $0x8] sm:$0xf]
        %v507 = vld [vmem:[#allocation5 + $0xc] sm:$0xf]
        %v508 = vld [vmem:[#allocation5 + $0x10] sm:$0xf]
        %v509 = vld [vmem:[#allocation5 + $0x14] sm:$0xf]
        %v510 = vld [vmem:[#allocation5 + $0x18] sm:$0xf]
        %v511 = vld [vmem:[#allocation5 + $0x1c] sm:$0xf]
        %v512 = vld [vmem:[#allocation5 + $0x20] sm:$0xf]
        %v513 = vld [vmem:[#allocation5 + $0x24] sm:$0xf]
        %v514 = vld [vmem:[#allocation5 + $0x28] sm:$0xf]
        %v515 = vld [vmem:[#allocation5 + $0x2c] sm:$0xf]
        %v516 = vld [vmem:[#allocation5 + $0x30] sm:$0xf]
        %v517 = vld [vmem:[#allocation5 + $0x34] sm:$0xf]
        %v518 = vld [vmem:[#allocation5 + $0x38] sm:$0xf]
        %v519 = vld [vmem:[#allocation5 + $0x3c] sm:$0xf]
        %v520 = vld [vmem:[%s3] sm:$0x1]
        %v522 = vlaneseq
        %v523 = vshrl.u32 %v522, 7
        %v524 = vsub.s32 0, %v523
        %v525 = vrot.slane %v520, %v524
        %v543 = vunpack.c.l.b16 %v504
        %v544 = vunpack.c.l.b16 %v505
        %v545 = vunpack.c.l.b16 %v506
        %v546 = vunpack.c.l.b16 %v507
        %v547 = vunpack.c.l.b16 %v508
        %v548 = vunpack.c.l.b16 %v509
        %v549 = vunpack.c.l.b16 %v510
        %v550 = vunpack.c.l.b16 %v511
        %v551 = vunpack.c.l.b16 %v512
        %v552 = vunpack.c.l.b16 %v513
        %v553 = vunpack.c.l.b16 %v514
        %v554 = vunpack.c.l.b16 %v515
        %v555 = vunpack.c.l.b16 %v516
        %v556 = vunpack.c.l.b16 %v517
        %v557 = vunpack.c.l.b16 %v518
        %v558 = vunpack.c.l.b16 %v519
        %v559 = vpack.c.b16 %v544, %v543
        %v560 = vpack.c.b16 %v546, %v545
        %v561 = vpack.c.b16 %v548, %v547
        %v562 = vpack.c.b16 %v550, %v549
        %v563 = vpack.c.b16 %v552, %v551
        %v564 = vpack.c.b16 %v554, %v553
        %v565 = vpack.c.b16 %v556, %v555
        %v566 = vpack.c.b16 %v558, %v557
        %575 = vmatprep.subr.bf16.mxu0 0
        %576 = vmatpush1.bf16.msra.mxu0 %v559
        %577 = vmatprep.subr.bf16.mxu0 0
        %578 = vmatpush1.bf16.msra.mxu0 %v560
        %579 = vmatprep.subr.bf16.mxu0 0
        %580 = vmatpush1.bf16.msra.mxu0 %v561
        %581 = vmatprep.subr.bf16.mxu0 0
        %582 = vmatpush1.bf16.msra.mxu0 %v562
        %583 = vmatprep.subr.bf16.mxu0 0
        %584 = vmatpush1.bf16.msra.mxu0 %v563
        %585 = vmatprep.subr.bf16.mxu0 0
        %586 = vmatpush1.bf16.msra.mxu0 %v564
        %587 = vmatprep.subr.bf16.mxu0 0
        %588 = vmatpush1.bf16.msra.mxu0 %v565
        %589 = vmatprep.subr.bf16.mxu0 0
        %590 = vmatpush1.bf16.msra.mxu0 %v566
        %591 = vmatprep.subr.bf16.mxu0 0
        %592 = vmatpush1.bf16.msra.mxu0 0
        %593 = vmatprep.subr.bf16.mxu0 0
        %594 = vmatpush1.bf16.msra.mxu0 0
        %595 = vmatprep.subr.bf16.mxu0 0
        %596 = vmatpush1.bf16.msra.mxu0 0
        %597 = vmatprep.subr.bf16.mxu0 0
        %598 = vmatpush1.bf16.msra.mxu0 0
        %599 = vmatprep.subr.bf16.mxu0 0
        %600 = vmatpush1.bf16.msra.mxu0 0
        %601 = vmatprep.subr.bf16.mxu0 0
        %602 = vmatpush1.bf16.msra.mxu0 0
        %603 = vmatprep.subr.bf16.mxu0 0
        %604 = vmatpush1.bf16.msra.mxu0 0
        %605 = vmatprep.subr.bf16.mxu0 0
        %606 = vmatpush1.bf16.msra.mxu0 0
        %607 = vmatprep.mubr.bf16.mxu0 0
        %608 = vmatmul.mubr.bf16.gmra.mrb[0].mxu0 %v397
        %v609 = vpop.f32.mrb[0].mxu0
        %v610 = vadd.f32 %v525, %v609
        %v611 = vpop.f32.mrb[0].mxu0
        %v612 = vpop.f32.mrb[0].mxu0
        %v613 = vpop.f32.mrb[0].mxu0
        %614 = vdwg.mxu0
        %v615 = vlaneseq
        %v616 = vshrl.u32 %v615, 7
        %v617 = vsub.s32 0, %v616
        %v618 = vrot.slane %v499, %v617
        %v619 = vmul.f32 %v610, %v618
        %v620 = vpack.c.bf16 %v619, %v619
        %v621 = vld [vmem:[#allocation8] sm:$0xf]
        %v622 = vld [vmem:[#allocation8 + $0x4] sm:$0xf]
        %v623 = vld [vmem:[#allocation8 + $0x8] sm:$0xf]
        %v624 = vld [vmem:[#allocation8 + $0xc] sm:$0xf]
        %v625 = vld [vmem:[#allocation8 + $0x10] sm:$0xf]
        %v626 = vld [vmem:[#allocation8 + $0x14] sm:$0xf]
        %v627 = vld [vmem:[#allocation8 + $0x18] sm:$0xf]
        %v628 = vld [vmem:[#allocation8 + $0x1c] sm:$0xf]
        %v629 = vld [vmem:[#allocation8 + $0x20] sm:$0xf]
        %v630 = vld [vmem:[#allocation8 + $0x24] sm:$0xf]
        %v631 = vld [vmem:[#allocation8 + $0x28] sm:$0xf]
        %v632 = vld [vmem:[#allocation8 + $0x2c] sm:$0xf]
        %v633 = vld [vmem:[#allocation8 + $0x30] sm:$0xf]
        %v634 = vld [vmem:[#allocation8 + $0x34] sm:$0xf]
        %v635 = vld [vmem:[#allocation8 + $0x38] sm:$0xf]
        %v636 = vld [vmem:[#allocation8 + $0x3c] sm:$0xf]
        %v637 = vld [vmem:[%s7] sm:$0x1]
        %v639 = vlaneseq
        %v640 = vshrl.u32 %v639, 7
        %v641 = vsub.s32 0, %v640
        %v642 = vrot.slane %v637, %v641
        %v660 = vunpack.c.l.b16 %v621
        %v661 = vunpack.c.l.b16 %v622
        %v662 = vunpack.c.l.b16 %v623
        %v663 = vunpack.c.l.b16 %v624
        %v664 = vunpack.c.l.b16 %v625
        %v665 = vunpack.c.l.b16 %v626
        %v666 = vunpack.c.l.b16 %v627
        %v667 = vunpack.c.l.b16 %v628
        %v668 = vunpack.c.l.b16 %v629
        %v669 = vunpack.c.l.b16 %v630
        %v670 = vunpack.c.l.b16 %v631
        %v671 = vunpack.c.l.b16 %v632
        %v672 = vunpack.c.l.b16 %v633
        %v673 = vunpack.c.l.b16 %v634
        %v674 = vunpack.c.l.b16 %v635
        %v675 = vunpack.c.l.b16 %v636
        %v676 = vpack.c.b16 %v661, %v660
        %v677 = vpack.c.b16 %v663, %v662
        %v678 = vpack.c.b16 %v665, %v664
        %v679 = vpack.c.b16 %v667, %v666
        %v680 = vpack.c.b16 %v669, %v668
        %v681 = vpack.c.b16 %v671, %v670
        %v682 = vpack.c.b16 %v673, %v672
        %v683 = vpack.c.b16 %v675, %v674
        %692 = vmatprep.subr.bf16.mxu0 0
        %693 = vmatpush1.bf16.msra.mxu0 %v676
        %694 = vmatprep.subr.bf16.mxu0 0
        %695 = vmatpush1.bf16.msra.mxu0 %v677
        %696 = vmatprep.subr.bf16.mxu0 0
        %697 = vmatpush1.bf16.msra.mxu0 %v678
        %698 = vmatprep.subr.bf16.mxu0 0
        %699 = vmatpush1.bf16.msra.mxu0 %v679
        %700 = vmatprep.subr.bf16.mxu0 0
        %701 = vmatpush1.bf16.msra.mxu0 %v680
        %702 = vmatprep.subr.bf16.mxu0 0
        %703 = vmatpush1.bf16.msra.mxu0 %v681
        %704 = vmatprep.subr.bf16.mxu0 0
        %705 = vmatpush1.bf16.msra.mxu0 %v682
        %706 = vmatprep.subr.bf16.mxu0 0
        %707 = vmatpush1.bf16.msra.mxu0 %v683
        %708 = vmatprep.subr.bf16.mxu0 0
        %709 = vmatpush1.bf16.msra.mxu0 0
        %710 = vmatprep.subr.bf16.mxu0 0
        %711 = vmatpush1.bf16.msra.mxu0 0
        %712 = vmatprep.subr.bf16.mxu0 0
        %713 = vmatpush1.bf16.msra.mxu0 0
        %714 = vmatprep.subr.bf16.mxu0 0
        %715 = vmatpush1.bf16.msra.mxu0 0
        %716 = vmatprep.subr.bf16.mxu0 0
        %717 = vmatpush1.bf16.msra.mxu0 0
        %718 = vmatprep.subr.bf16.mxu0 0
        %719 = vmatpush1.bf16.msra.mxu0 0
        %720 = vmatprep.subr.bf16.mxu0 0
        %721 = vmatpush1.bf16.msra.mxu0 0
        %722 = vmatprep.subr.bf16.mxu0 0
        %723 = vmatpush1.bf16.msra.mxu0 0
        %724 = vmatprep.mubr.bf16.mxu0 0
        %725 = vmatmul.mubr.bf16.gmra.mrb[0].mxu0 %v620
        %v726 = vpop.f32.mrb[0].mxu0
        %v727 = vadd.f32 %v642, %v726
        %v728 = vpop.f32.mrb[0].mxu0
        %v729 = vpop.f32.mrb[0].mxu0
        %v730 = vpop.f32.mrb[0].mxu0
        %731 = vdwg.mxu0
        %732 = vst [vmem:[%s392] sm:$0xff] %v727
        %s733 = sand.u32 %s229, 1
        %s734 = scalar_lea.sflag [#allocation4], %s733
        %s735 = sand.u32 %s229, 1
        %s736 = smul.addr %s735, 8
        %s737 = scalar_lea.vmem [#allocation10], %s736
        // Predicated region
        $region69: #{tpu_custom_call.1} parent=51 // pred_check
          %p738 = pneg %p239
        $region70: #{tpu_custom_call.1} parent=51 // pred_check_branch
          %740 = sbr.rel (%p738) target = $region72
        $region71: #{tpu_custom_call.1} parent=51 // pred_region
          %s742 = ssub.s32 128, 128
          %743 = vsyncadd %s734, %s742
          %s744 = sadd.s32 %s32, %s31
          %s745 = smul.addr %s744, 128
          %s746 = scalar_lea.hbm %s8, %s745
          %s748 = sshll.u32 %s737, 4
          %s749 = int_to_ptr.vmem [resolvable:$true] %s748
          %751 = dma.vmem_to_hbm [thread:$0]  %s749, 128, %s746, %s734
        $region72: #{tpu_custom_call.1} parent=51 // pred_fallthru
          _
      $region52: #{tpu_custom_call.1} parent=5 // pred_fallthru
        _
      %p752 = scmp.le.s32.totalorder 2, %s22
      // Predicated region
      $region73: #{tpu_custom_call.1} parent=5 // pred_check
        %p753 = pneg %p752
      $region74: #{tpu_custom_call.1} parent=5 // pred_check_branch
        %755 = sbr.rel (%p753) target = $region76
      $region75: #{tpu_custom_call.1} parent=5 // pred_region
        %s756 = ssub.s32 %s22, 2
        // Predicated region
        $region77: #{tpu_custom_call.1} parent=75 // pred_check
          %p757 = pneg %p245
        $region78: #{tpu_custom_call.1} parent=75 // pred_check_branch
          %759 = sbr.rel (%p757) target = $region80
        $region79: #{tpu_custom_call.1} parent=75 // pred_region
          %s760 = sand.u32 %s230, 1
          %s761 = scalar_lea.sflag [#allocation4], %s760
          %s762 = sand.u32 %s230, 1
          %s763 = smul.addr %s762, 8
          %s764 = scalar_lea.vmem [#allocation10], %s763
          %765 = dma.done %s761, 128
        $region80: #{tpu_custom_call.1} parent=75 // pred_fallthru
          _
      $region76: #{tpu_custom_call.1} parent=5 // pred_fallthru
        _
    $region6: #{tpu_custom_call.1} parent=1 // loop_footer
      %s26 = sadd.s32 1, %s22
    $region7: #{tpu_custom_call.1} parent=1 // loop_footer_branch
      %21 = sbr.rel target = $region3
    $region8: #{tpu_custom_call.1} parent=1 // loop_exit
      _
    %766 = vsyncpa [#allocation3], 1
    %s767 = scalar_lea.sflag [#allocation3], 1
    %768 = vsyncpa %s767, 1
    %769 = vsyncpa [#allocation6], 1
    %770 = vsyncpa [#allocation9], 1
    %771 = vsyncpa [#allocation4], 1
    %s772 = scalar_lea.sflag [#allocation4], 1
    %773 = vsyncpa %s772, 1

// kernel: tpu_custom_call.1
$region0: #{tpu_custom_call.1}
  #allocation0 [shape = 'u32[]', space=smem, size = 0x4, offset = 0x4, fixed_abs, tag = 'smem constant byte address 0x4 - core index']
  #allocation1 [shape = 'u32[144,128]{1,0:T(1,128)}', space=vmem, size = 0x12000, scoped, tag = 'internal scratch']
  %s0 = inlined_call_operand.vmem [shape: bf16[2,1,128], index: 0, kind: input, shape index: {}]
  %s1 = inlined_call_operand.hbm [shape: bf16[2,8,128], index: 1, kind: input, shape index: {}]
  %s2 = inlined_call_operand.hbm [shape: bf16[128,128], index: 2, kind: input, shape index: {}]
  %s3 = inlined_call_operand.vmem [shape: f32[1,128], index: 3, kind: input, shape index: {}]
  %s4 = inlined_call_operand.hbm [shape: bf16[128,128], index: 4, kind: input, shape index: {}]
  %s5 = inlined_call_operand.vmem [shape: f32[1,128], index: 5, kind: input, shape index: {}]
  %s6 = inlined_call_operand.hbm [shape: bf16[128,128], index: 6, kind: input, shape index: {}]
  %s7 = inlined_call_operand.vmem [shape: f32[1,128], index: 7, kind: input, shape index: {}]
  %s8 = inlined_call_operand.hbm [shape: f32[2,8,128], index: 8, kind: output, shape index: {}]
  %s9 = sld [smem:[#allocation0]]
  $region81: #{tpu_custom_call.1} parent=0
    _
  %s11 = ssub.s32 1, %s9
  %s12 = scalar_select 0, %s11, %s9
  $region1: #{tpu_custom_call.1} parent=0
    #allocation2 [shape = 'u8[4096]{0}', space=vmem, size = 0x1000, scoped, tag = 'input window, operand 1']
    #allocation3 [shape = 's32[2]{0}', space=sflag, size = 0x8, scoped, tag = 'scoped memory for tpu_custom_call.1']
    #allocation4 [shape = 's32[2]{0}', space=sflag, size = 0x8, scoped, tag = 'scoped memory for tpu_custom_call.1']
    #allocation5 [shape = 'u8[32768]{0}', space=vmem, size = 0x8000, scoped, tag = 'input window, operand 2, single buffered']
    #allocation6 [shape = 's32[1]{0}', space=sflag, size = 0x4, scoped, tag = 'scoped memory for tpu_custom_call.1']
    #allocation7 [shape = 'u8[32768]{0}', space=vmem, size = 0x8000, scoped, tag = 'input window, operand 4, single buffered']
    #allocation8 [shape = 'u8[32768]{0}', space=vmem, size = 0x8000, scoped, tag = 'input window, operand 6, single buffered']
    #allocation9 [shape = 's32[1]{0}', space=sflag, size = 0x4, scoped, tag = 'scoped memory for tpu_custom_call.1']
    #allocation10 [shape = 'u8[8192]{0}', space=vmem, size = 0x2000, scoped, tag = 'output window, operand 0']
    %13 = vsyncpa [#allocation3], 0
    %s14 = scalar_lea.sflag [#allocation3], 1
    %15 = vsyncpa %s14, 0
    %16 = vsyncpa [#allocation6], 0
    %17 = vsyncpa [#allocation9], 0
    %18 = vsyncpa [#allocation4], 0
    %s19 = scalar_lea.sflag [#allocation4], 1
    %20 = vsyncpa %s19, 0
    loop: start=0, step=1, limit=4
    $region2: #{tpu_custom_call.1} parent=1 // loop_pre_header
      _
    $region3: #{tpu_custom_call.1} parent=1 // loop_header
      %s22 = sphi 0, %s26
      %p23 = scmp.ge.s32.totalorder %s22, 4
      %s29 = sphi 0, %s41
      %s30 = sphi 0, %s37
      %s31 = sphi 0, %s29
      %s32 = sphi 0, %s30
      %s33 = sphi 0, %s31
      %s34 = sphi 0, %s32
      %s44 = sphi 0, %s46
      %s47 = sphi 0, %s44
      %s48 = sphi 0, %s47
      %s64 = sphi 0, %s48
      %s72 = sphi 0, %s74
      %s75 = sphi 0, %s72
      %s76 = sphi 0, %s75
      %s92 = sphi 0, %s76
      %s96 = sphi 0, %s96
      %s98 = sphi 0, %s96
      %s99 = sphi 0, %s98
      %s113 = sphi 0, %s99
      %s117 = sphi 0, %s117
      %s119 = sphi 0, %s117
      %s120 = sphi 0, %s119
      %s134 = sphi 0, %s120
      %s138 = sphi 0, %s138
      %s140 = sphi 0, %s138
      %s141 = sphi 0, %s140
      %s155 = sphi 0, %s141
      %s159 = sphi 0, %s159
      %s161 = sphi 0, %s159
      %s162 = sphi 0, %s161
      %s176 = sphi 0, %s162
      %s180 = sphi 0, %s180
      %s182 = sphi 0, %s180
      %s183 = sphi 0, %s182
      %s197 = sphi 0, %s183
      %s201 = sphi 0, %s201
      %s203 = sphi 0, %s201
      %s204 = sphi 0, %s203
      %s218 = sphi 0, %s204
      %s226 = sphi 0, %s228
      %s229 = sphi 0, %s226
      %s230 = sphi 0, %s229
      %s246 = sphi 0, %s230
    $region4: #{tpu_custom_call.1} parent=1 // loop_header_branch
      %25 = sbr.rel (%p23) target = $region8
    $region5: #{tpu_custom_call.1} parent=1 // loop_body
      %s27 = ssub.s32 %s22, 1
      %s28 = ssub.s32 %s22, 2
      %s35 = sadd.s32 1, %s30
      %p36 = scmp.ge.s32.totalorder %s35, 1
      %s37 = scalar_select %p36, 0, %s35
      %s38 = sadd.s32 1, %s29
      %s39 = scalar_select %p36, %s38, %s29
      %p40 = scmp.ge.s32.totalorder %s39, 2
      %s41 = scalar_select %p40, 0, %s39
      %s42 = ssub.s32 %s29, %s41
      %p43 = scmp.eq.s32.totalorder %s42, 0
      %s45 = sadd.s32 %s44, 1
      %s46 = scalar_select %p43, %s44, %s45
      %p49 = pneg %p43
      %p50 = scmp.eq.s32.totalorder %s22, 1
      %p51 = por %p49, %p50
      %p52 = scmp.ne.s32.totalorder %s44, %s47
      %p53 = scmp.eq.s32.totalorder %s22, 0
      %p54 = por %p52, %p53
      %p55 = scmp.ne.s32.totalorder %s44, %s47
      %p56 = scmp.eq.s32.totalorder %s27, 1
      %p57 = por %p55, %p56
      %p58 = scmp.ne.s32.totalorder %s47, %s48
      %p59 = scmp.eq.s32.totalorder %s27, 0
      %p60 = por %p58, %p59
      %p61 = scmp.ne.s32.totalorder %s47, %s48
      %p62 = scmp.eq.s32.totalorder %s28, 1
      %p63 = por %p61, %p62
      %p65 = scmp.ne.s32.totalorder %s48, %s64
      %p66 = scmp.eq.s32.totalorder %s28, 0
      %p67 = por %p65, %p66
      %s68 = ssub.s32 %s29, %s41
      %s69 = ssub.s32 %s30, %s37
      %s70 = sor.u32 %s68, %s69
      %p71 = scmp.eq.s32.totalorder %s70, 0
      %s73 = sadd.s32 %s72, 1
      %s74 = scalar_select %p71, %s72, %s73
      %p77 = pneg %p71
      %p78 = scmp.eq.s32.totalorder %s22, 1
      %p79 = por %p77, %p78
      %p80 = scmp.ne.s32.totalorder %s72, %s75
      %p81 = scmp.eq.s32.totalorder %s22, 0
      %p82 = por %p80, %p81
      %p83 = scmp.ne.s32.totalorder %s72, %s75
      %p84 = scmp.eq.s32.totalorder %s27, 1
      %p85 = por %p83, %p84
      %p86 = scmp.ne.s32.totalorder %s75, %s76
      %p87 = scmp.eq.s32.totalorder %s27, 0
      %p88 = por %p86, %p87
      %p89 = scmp.ne.s32.totalorder %s75, %s76
      %p90 = scmp.eq.s32.totalorder %s28, 1
      %p91 = por %p89, %p90
      %p93 = scmp.ne.s32.totalorder %s76, %s92
      %p94 = scmp.eq.s32.totalorder %s28, 0
      %p95 = por %p93, %p94
      %s97 = sadd.s32 %s96, 1
      %p100 = scmp.eq.s32.totalorder %s22, 1
      %p101 = scmp.ne.s32.totalorder %s96, %s98
      %p102 = scmp.eq.s32.totalorder %s22, 0
      %p103 = por %p101, %p102
      %p104 = scmp.ne.s32.totalorder %s96, %s98
      %p105 = scmp.eq.s32.totalorder %s27, 1
      %p106 = por %p104, %p105
      %p107 = scmp.ne.s32.totalorder %s98, %s99
      %p108 = scmp.eq.s32.totalorder %s27, 0
      %p109 = por %p107, %p108
      %p110 = scmp.ne.s32.totalorder %s98, %s99
      %p111 = scmp.eq.s32.totalorder %s28, 1
      %p112 = por %p110, %p111
      %p114 = scmp.ne.s32.totalorder %s99, %s113
      %p115 = scmp.eq.s32.totalorder %s28, 0
      %p116 = por %p114, %p115
      %s118 = sadd.s32 %s117, 1
      %p121 = scmp.eq.s32.totalorder %s22, 1
      %p122 = scmp.ne.s32.totalorder %s117, %s119
      %p123 = scmp.eq.s32.totalorder %s22, 0
      %p124 = por %p122, %p123
      %p125 = scmp.ne.s32.totalorder %s117, %s119
      %p126 = scmp.eq.s32.totalorder %s27, 1
      %p127 = por %p125, %p126
      %p128 = scmp.ne.s32.totalorder %s119, %s120
      %p129 = scmp.eq.s32.totalorder %s27, 0
      %p130 = por %p128, %p129
      %p131 = scmp.ne.s32.totalorder %s119, %s120
      %p132 = scmp.eq.s32.totalorder %s28, 1
      %p133 = por %p131, %p132
      %p135 = scmp.ne.s32.totalorder %s120, %s134
      %p136 = scmp.eq.s32.totalorder %s28, 0
      %p137 = por %p135, %p136
      %s139 = sadd.s32 %s138, 1
      %p142 = scmp.eq.s32.totalorder %s22, 1
      %p143 = scmp.ne.s32.totalorder %s138, %s140
      %p144 = scmp.eq.s32.totalorder %s22, 0
      %p145 = por %p143, %p144
      %p146 = scmp.ne.s32.totalorder %s138, %s140
      %p147 = scmp.eq.s32.totalorder %s27, 1
      %p148 = por %p146, %p147
      %p149 = scmp.ne.s32.totalorder %s140, %s141
      %p150 = scmp.eq.s32.totalorder %s27, 0
      %p151 = por %p149, %p150
      %p152 = scmp.ne.s32.totalorder %s140, %s141
      %p153 = scmp.eq.s32.totalorder %s28, 1
      %p154 = por %p152, %p153
      %p156 = scmp.ne.s32.totalorder %s141, %s155
      %p157 = scmp.eq.s32.totalorder %s28, 0
      %p158 = por %p156, %p157
      %s160 = sadd.s32 %s159, 1
      %p163 = scmp.eq.s32.totalorder %s22, 1
      %p164 = scmp.ne.s32.totalorder %s159, %s161
      %p165 = scmp.eq.s32.totalorder %s22, 0
      %p166 = por %p164, %p165
      %p167 = scmp.ne.s32.totalorder %s159, %s161
      %p168 = scmp.eq.s32.totalorder %s27, 1
      %p169 = por %p167, %p168
      %p170 = scmp.ne.s32.totalorder %s161, %s162
      %p171 = scmp.eq.s32.totalorder %s27, 0
      %p172 = por %p170, %p171
      %p173 = scmp.ne.s32.totalorder %s161, %s162
      %p174 = scmp.eq.s32.totalorder %s28, 1
      %p175 = por %p173, %p174
      %p177 = scmp.ne.s32.totalorder %s162, %s176
      %p178 = scmp.eq.s32.totalorder %s28, 0
      %p179 = por %p177, %p178
      %s181 = sadd.s32 %s180, 1
      %p184 = scmp.eq.s32.totalorder %s22, 1
      %p185 = scmp.ne.s32.totalorder %s180, %s182
      %p186 = scmp.eq.s32.totalorder %s22, 0
      %p187 = por %p185, %p186
      %p188 = scmp.ne.s32.totalorder %s180, %s182
      %p189 = scmp.eq.s32.totalorder %s27, 1
      %p190 = por %p188, %p189
      %p191 = scmp.ne.s32.totalorder %s182, %s183
      %p192 = scmp.eq.s32.totalorder %s27, 0
      %p193 = por %p191, %p192
      %p194 = scmp.ne.s32.totalorder %s182, %s183
      %p195 = scmp.eq.s32.totalorder %s28, 1
      %p196 = por %p194, %p195
      %p198 = scmp.ne.s32.totalorder %s183, %s197
      %p199 = scmp.eq.s32.totalorder %s28, 0
      %p200 = por %p198, %p199
      %s202 = sadd.s32 %s201, 1
      %p205 = scmp.eq.s32.totalorder %s22, 1
      %p206 = scmp.ne.s32.totalorder %s201, %s203
      %p207 = scmp.eq.s32.totalorder %s22, 0
      %p208 = por %p206, %p207
      %p209 = scmp.ne.s32.totalorder %s201, %s203
      %p210 = scmp.eq.s32.totalorder %s27, 1
      %p211 = por %p209, %p210
      %p212 = scmp.ne.s32.totalorder %s203, %s204
      %p213 = scmp.eq.s32.totalorder %s27, 0
      %p214 = por %p212, %p213
      %p215 = scmp.ne.s32.totalorder %s203, %s204
      %p216 = scmp.eq.s32.totalorder %s28, 1
      %p217 = por %p215, %p216
      %p219 = scmp.ne.s32.totalorder %s204, %s218
      %p220 = scmp.eq.s32.totalorder %s28, 0
      %p221 = por %p219, %p220
      %s222 = ssub.s32 %s29, %s41
      %s223 = ssub.s32 %s30, %s37
      %s224 = sor.u32 %s222, %s223
      %p225 = scmp.eq.s32.totalorder %s224, 0
      %s227 = sadd.s32 %s226, 1
      %s228 = scalar_select %p225, %s226, %s227
      %p231 = pneg %p225
      %p232 = scmp.eq.s32.totalorder %s22, 1
      %p233 = por %p231, %p232
      %p234 = scmp.ne.s32.totalorder %s226, %s229
      %p235 = scmp.eq.s32.totalorder %s22, 0
      %p236 = por %p234, %p235
      %p237 = scmp.ne.s32.totalorder %s226, %s229
      %p238 = scmp.eq.s32.totalorder %s27, 1
      %p239 = por %p237, %p238
      %p240 = scmp.ne.s32.totalorder %s229, %s230
      %p241 = scmp.eq.s32.totalorder %s27, 0
      %p242 = por %p240, %p241
      %p243 = scmp.ne.s32.totalorder %s229, %s230
      %p244 = scmp.eq.s32.totalorder %s28, 1
      %p245 = por %p243, %p244
      %p247 = scmp.ne.s32.totalorder %s230, %s246
      %p248 = scmp.eq.s32.totalorder %s28, 0
      %p249 = por %p247, %p248
      %p250 = scmp.le.s32.totalorder 1, %s22
      %p251 = scmp.lt.s32.totalorder %s22, 3
      %p252 = pnand %p250, %p251
      %p253 = pneg %p252
      // Predicated region
      $region9: #{tpu_custom_call.1} parent=5 // pred_check
        _
      $region10: #{tpu_custom_call.1} parent=5 // pred_check_branch
        %255 = sbr.rel (%p252) target = $region12
      $region11: #{tpu_custom_call.1} parent=5 // pred_region
        %s256 = ssub.s32 %s22, 1
        // Predicated region
        $region13: #{tpu_custom_call.1} parent=11 // pred_check
          %p257 = pneg %p109
        $region14: #{tpu_custom_call.1} parent=11 // pred_check_branch
          %259 = sbr.rel (%p257) target = $region16
        $region15: #{tpu_custom_call.1} parent=11 // pred_region
          %s261 = ssub.s32 1024, 1024
          %262 = vsyncadd [#allocation6], %s261
          %s263 = sshll.u32 [#allocation5], 4
          %s264 = int_to_ptr.vmem [resolvable:$true] %s263
          %269 = dma.hbm_to_vmem [thread:$0]  %s2, 1024, %s264, [#allocation6], 64, 64, 4
        $region16: #{tpu_custom_call.1} parent=11 // pred_fallthru
          _
        // Predicated region
        $region17: #{tpu_custom_call.1} parent=11 // pred_check
          %p270 = pneg %p130
        $region18: #{tpu_custom_call.1} parent=11 // pred_check_branch
          %272 = sbr.rel (%p270) target = $region20
        $region19: #{tpu_custom_call.1} parent=11 // pred_region
          _
        $region20: #{tpu_custom_call.1} parent=11 // pred_fallthru
          _
        // Predicated region
        $region21: #{tpu_custom_call.1} parent=11 // pred_check
          %p273 = pneg %p151
        $region22: #{tpu_custom_call.1} parent=11 // pred_check_branch
          %275 = sbr.rel (%p273) target = $region24
        $region23: #{tpu_custom_call.1} parent=11 // pred_region
          %s277 = ssub.s32 1024, 1024
          %278 = vsyncadd [#allocation6], %s277
          %s279 = sshll.u32 [#allocation7], 4
          %s280 = int_to_ptr.vmem [resolvable:$true] %s279
          %285 = dma.hbm_to_vmem [thread:$0]  %s4, 1024, %s280, [#allocation6], 64, 64, 4
        $region24: #{tpu_custom_call.1} parent=11 // pred_fallthru
          _
        // Predicated region
        $region25: #{tpu_custom_call.1} parent=11 // pred_check
          %p286 = pneg %p172
        $region26: #{tpu_custom_call.1} parent=11 // pred_check_branch
          %288 = sbr.rel (%p286) target = $region28
        $region27: #{tpu_custom_call.1} parent=11 // pred_region
          _
        $region28: #{tpu_custom_call.1} parent=11 // pred_fallthru
          _
        // Predicated region
        $region29: #{tpu_custom_call.1} parent=11 // pred_check
          %p289 = pneg %p193
        $region30: #{tpu_custom_call.1} parent=11 // pred_check_branch
          %291 = sbr.rel (%p289) target = $region32
        $region31: #{tpu_custom_call.1} parent=11 // pred_region
          %s293 = ssub.s32 1024, 1024
          %294 = vsyncadd [#allocation9], %s293
          %s295 = sshll.u32 [#allocation8], 4
          %s296 = int_to_ptr.vmem [resolvable:$true] %s295
          %301 = dma.hbm_to_vmem [thread:$0]  %s6, 1024, %s296, [#allocation9], 64, 64, 4
        $region32: #{tpu_custom_call.1} parent=11 // pred_fallthru
          _
        // Predicated region
        $region33: #{tpu_custom_call.1} parent=11 // pred_check
          %p302 = pneg %p214
        $region34: #{tpu_custom_call.1} parent=11 // pred_check_branch
          %304 = sbr.rel (%p302) target = $region36
        $region35: #{tpu_custom_call.1} parent=11 // pred_region
          _
        $region36: #{tpu_custom_call.1} parent=11 // pred_fallthru
          _
      $region12: #{tpu_custom_call.1} parent=5 // pred_fallthru
        _
      %p305 = scmp.lt.s32.totalorder %s22, 2
      // Predicated region
      $region37: #{tpu_custom_call.1} parent=5 // pred_check
        %p306 = pneg %p305
      $region38: #{tpu_custom_call.1} parent=5 // pred_check_branch
        %308 = sbr.rel (%p306) target = $region40
      $region39: #{tpu_custom_call.1} parent=5 // pred_region
        // Predicated region
        $region41: #{tpu_custom_call.1} parent=39 // pred_check
          %p309 = pneg %p54
        $region42: #{tpu_custom_call.1} parent=39 // pred_check_branch
          %311 = sbr.rel (%p309) target = $region44
        $region43: #{tpu_custom_call.1} parent=39 // pred_region
          %p312 = scmp.lt.s32.totalorder %s29, 1
          %s313 = scalar_select %p312, %s29, 1
          %s314 = scalar_lea.vmem %s0, %s313
        $region44: #{tpu_custom_call.1} parent=39 // pred_fallthru
          _
        // Predicated region
        $region45: #{tpu_custom_call.1} parent=39 // pred_check
          %p315 = pneg %p82
        $region46: #{tpu_custom_call.1} parent=39 // pred_check_branch
          %317 = sbr.rel (%p315) target = $region48
        $region47: #{tpu_custom_call.1} parent=39 // pred_region
          %s318 = sand.u32 %s72, 1
          %s319 = scalar_lea.sflag [#allocation3], %s318
          %s320 = sand.u32 %s72, 1
          %s321 = smul.addr %s320, 4
          %s322 = scalar_lea.vmem [#allocation2], %s321
          %s324 = ssub.s32 64, 64
          %325 = vsyncadd %s319, %s324
          %s326 = sadd.s32 %s30, %s29
          %s327 = smul.addr %s326, 64
          %s328 = scalar_lea.hbm %s1, %s327
          %s330 = sshll.u32 %s322, 4
          %s331 = int_to_ptr.vmem [resolvable:$true] %s330
          %333 = dma.hbm_to_vmem [thread:$0]  %s328, 64, %s331, %s319
        $region48: #{tpu_custom_call.1} parent=39 // pred_fallthru
          _
      $region40: #{tpu_custom_call.1} parent=5 // pred_fallthru
        _
      %p334 = scmp.le.s32.totalorder 1, %s22
      %p335 = scmp.lt.s32.totalorder %s22, 3
      %p336 = pnand %p334, %p335
      %p337 = pneg %p336
      // Predicated region
      $region49: #{tpu_custom_call.1} parent=5 // pred_check
        _
      $region50: #{tpu_custom_call.1} parent=5 // pred_check_branch
        %339 = sbr.rel (%p336) target = $region52
      $region51: #{tpu_custom_call.1} parent=5 // pred_region
        %s340 = ssub.s32 %s22, 1
        %s341 = sand.u32 %s75, 1
        %s342 = scalar_lea.sflag [#allocation3], %s341
        %s343 = sand.u32 %s75, 1
        %s344 = smul.addr %s343, 4
        %s345 = scalar_lea.vmem [#allocation2], %s344
        // Predicated region
        $region53: #{tpu_custom_call.1} parent=51 // pred_check
          %p346 = pneg %p88
        $region54: #{tpu_custom_call.1} parent=51 // pred_check_branch
          %348 = sbr.rel (%p346) target = $region56
        $region55: #{tpu_custom_call.1} parent=51 // pred_region
          %349 = dma.done %s342, 64
        $region56: #{tpu_custom_call.1} parent=51 // pred_fallthru
          _
        // Predicated region
        $region57: #{tpu_custom_call.1} parent=51 // pred_check
          %p350 = pneg %p109
        $region58: #{tpu_custom_call.1} parent=51 // pred_check_branch
          %352 = sbr.rel (%p350) target = $region60
        $region59: #{tpu_custom_call.1} parent=51 // pred_region
          %353 = dma.done [#allocation6], 1024
        $region60: #{tpu_custom_call.1} parent=51 // pred_fallthru
          _
        // Predicated region
        $region61: #{tpu_custom_call.1} parent=51 // pred_check
          %p354 = pneg %p151
        $region62: #{tpu_custom_call.1} parent=51 // pred_check_branch
          %356 = sbr.rel (%p354) target = $region64
        $region63: #{tpu_custom_call.1} parent=51 // pred_region
          %357 = dma.done [#allocation6], 1024
        $region64: #{tpu_custom_call.1} parent=51 // pred_fallthru
          _
        // Predicated region
        $region65: #{tpu_custom_call.1} parent=51 // pred_check
          %p358 = pneg %p193
        $region66: #{tpu_custom_call.1} parent=51 // pred_check_branch
          %360 = sbr.rel (%p358) target = $region68
        $region67: #{tpu_custom_call.1} parent=51 // pred_region
          %361 = dma.done [#allocation9], 1024
        $region68: #{tpu_custom_call.1} parent=51 // pred_fallthru
          _
        %p362 = scmp.lt.s32.totalorder %s31, 1
        %s363 = scalar_select %p362, %s31, 1
        %s364 = scalar_lea.vmem %s0, %s363
        %p365 = pneg %p60
        %p366 = pneg %p57
        %s367 = sand.u32 %s75, 1
        %s368 = scalar_lea.sflag [#allocation3], %s367
        %s369 = sand.u32 %s75, 1
        %s370 = smul.addr %s369, 4
        %s371 = scalar_lea.vmem [#allocation2], %s370
        %p372 = pneg %p88
        %p373 = pneg %p85
        %p374 = pneg %p109
        %p375 = pneg %p106
        %p376 = pneg %p130
        %p377 = pneg %p127
        %p378 = pneg %p151
        %p379 = pneg %p148
        %p380 = pneg %p172
        %p381 = pneg %p169
        %p382 = pneg %p193
        %p383 = pneg %p190
        %p384 = pneg %p214
        %p385 = pneg %p211
        %p386 = pneg %p242
        %p387 = pneg %p239
        %s388 = sand.u32 %s229, 1
        %s389 = scalar_lea.sflag [#allocation4], %s388
        %s390 = sand.u32 %s229, 1
        %s391 = smul.addr %s390, 8
        %s392 = scalar_lea.vmem [#allocation10], %s391
        %p393 = scmp.lt.s32.totalorder %s31, 1
        %s394 = scalar_select %p393, %s31, 1
        %s395 = scalar_lea.vmem %s0, %s394
        %v397 = vld [vmem:[%s345] sm:$0xf]
        %v398 = vld [vmem:[%s395] sm:$0x1]
        %v399 = vld [vmem:[#allocation7] sm:$0xf]
        %v400 = vld [vmem:[#allocation7 + $0x4] sm:$0xf]
        %v401 = vld [vmem:[#allocation7 + $0x8] sm:$0xf]
        %v402 = vld [vmem:[#allocation7 + $0xc] sm:$0xf]
        %v403 = vld [vmem:[#allocation7 + $0x10] sm:$0xf]
        %v404 = vld [vmem:[#allocation7 + $0x14] sm:$0xf]
        %v405 = vld [vmem:[#allocation7 + $0x18] sm:$0xf]
        %v406 = vld [vmem:[#allocation7 + $0x1c] sm:$0xf]
        %v407 = vld [vmem:[#allocation7 + $0x20] sm:$0xf]
        %v408 = vld [vmem:[#allocation7 + $0x24] sm:$0xf]
        %v409 = vld [vmem:[#allocation7 + $0x28] sm:$0xf]
        %v410 = vld [vmem:[#allocation7 + $0x2c] sm:$0xf]
        %v411 = vld [vmem:[#allocation7 + $0x30] sm:$0xf]
        %v412 = vld [vmem:[#allocation7 + $0x34] sm:$0xf]
        %v413 = vld [vmem:[#allocation7 + $0x38] sm:$0xf]
        %v414 = vld [vmem:[#allocation7 + $0x3c] sm:$0xf]
        %v415 = vld [vmem:[%s5] sm:$0x1]
        %v432 = vunpack.c.l.b16 %v399
        %v433 = vunpack.c.l.b16 %v400
        %v434 = vunpack.c.l.b16 %v401
        %v435 = vunpack.c.l.b16 %v402
        %v436 = vunpack.c.l.b16 %v403
        %v437 = vunpack.c.l.b16 %v404
        %v438 = vunpack.c.l.b16 %v405
        %v439 = vunpack.c.l.b16 %v406
        %v440 = vunpack.c.l.b16 %v407
        %v441 = vunpack.c.l.b16 %v408
        %v442 = vunpack.c.l.b16 %v409
        %v443 = vunpack.c.l.b16 %v410
        %v444 = vunpack.c.l.b16 %v411
        %v445 = vunpack.c.l.b16 %v412
        %v446 = vunpack.c.l.b16 %v413
        %v447 = vunpack.c.l.b16 %v414
        %v448 = vpack.c.b16 %v433, %v432
        %v449 = vpack.c.b16 %v435, %v434
        %v450 = vpack.c.b16 %v437, %v436
        %v451 = vpack.c.b16 %v439, %v438
        %v452 = vpack.c.b16 %v441, %v440
        %v453 = vpack.c.b16 %v443, %v442
        %v454 = vpack.c.b16 %v445, %v444
        %v455 = vpack.c.b16 %v447, %v446
        %464 = vmatprep.subr.bf16.mxu0 0
        %465 = vmatpush1.bf16.msra.mxu0 %v448
        %466 = vmatprep.subr.bf16.mxu0 0
        %467 = vmatpush1.bf16.msra.mxu0 %v449
        %468 = vmatprep.subr.bf16.mxu0 0
        %469 = vmatpush1.bf16.msra.mxu0 %v450
        %470 = vmatprep.subr.bf16.mxu0 0
        %471 = vmatpush1.bf16.msra.mxu0 %v451
        %472 = vmatprep.subr.bf16.mxu0 0
        %473 = vmatpush1.bf16.msra.mxu0 %v452
        %474 = vmatprep.subr.bf16.mxu0 0
        %475 = vmatpush1.bf16.msra.mxu0 %v453
        %476 = vmatprep.subr.bf16.mxu0 0
        %477 = vmatpush1.bf16.msra.mxu0 %v454
        %478 = vmatprep.subr.bf16.mxu0 0
        %479 = vmatpush1.bf16.msra.mxu0 %v455
        %480 = vmatprep.subr.bf16.mxu0 0
        %481 = vmatpush1.bf16.msra.mxu0 0
        %482 = vmatprep.subr.bf16.mxu0 0
        %483 = vmatpush1.bf16.msra.mxu0 0
        %484 = vmatprep.subr.bf16.mxu0 0
        %485 = vmatpush1.bf16.msra.mxu0 0
        %486 = vmatprep.subr.bf16.mxu0 0
        %487 = vmatpush1.bf16.msra.mxu0 0
        %488 = vmatprep.subr.bf16.mxu0 0
        %489 = vmatpush1.bf16.msra.mxu0 0
        %490 = vmatprep.subr.bf16.mxu0 0
        %491 = vmatpush1.bf16.msra.mxu0 0
        %492 = vmatprep.subr.bf16.mxu0 0
        %493 = vmatpush1.bf16.msra.mxu0 0
        %494 = vmatprep.subr.bf16.mxu0 0
        %495 = vmatpush1.bf16.msra.mxu0 0
        %496 = vmatprep.mubr.bf16.mxu0 0
        %497 = vmatmul.mubr.bf16.gmra.mrb[0].mxu0 %v398
        %v498 = vpop.f32.mrb[0].mxu0
        %v499 = vadd.f32 %v415, %v498
        %v500 = vpop.f32.mrb[0].mxu0
        %v501 = vpop.f32.mrb[0].mxu0
        %v502 = vpop.f32.mrb[0].mxu0
        %503 = vdwg.mxu0
        %v504 = vld [vmem:[#allocation5] sm:$0xf]
        %v505 = vld [vmem:[#allocation5 + $0x4] sm:$0xf]
        %v506 = vld [vmem:[#allocation5 + $0x8] sm:$0xf]
        %v507 = vld [vmem:[#allocation5 + $0xc] sm:$0xf]
        %v508 = vld [vmem:[#allocation5 + $0x10] sm:$0xf]
        %v509 = vld [vmem:[#allocation5 + $0x14] sm:$0xf]
        %v510 = vld [vmem:[#allocation5 + $0x18] sm:$0xf]
        %v511 = vld [vmem:[#allocation5 + $0x1c] sm:$0xf]
        %v512 = vld [vmem:[#allocation5 + $0x20] sm:$0xf]
        %v513 = vld [vmem:[#allocation5 + $0x24] sm:$0xf]
        %v514 = vld [vmem:[#allocation5 + $0x28] sm:$0xf]
        %v515 = vld [vmem:[#allocation5 + $0x2c] sm:$0xf]
        %v516 = vld [vmem:[#allocation5 + $0x30] sm:$0xf]
        %v517 = vld [vmem:[#allocation5 + $0x34] sm:$0xf]
        %v518 = vld [vmem:[#allocation5 + $0x38] sm:$0xf]
        %v519 = vld [vmem:[#allocation5 + $0x3c] sm:$0xf]
        %v520 = vld [vmem:[%s3] sm:$0x1]
        %v522 = vlaneseq
        %v523 = vshrl.u32 %v522, 7
        %v524 = vsub.s32 0, %v523
        %v525 = vrot.slane %v520, %v524
        %v543 = vunpack.c.l.b16 %v504
        %v544 = vunpack.c.l.b16 %v505
        %v545 = vunpack.c.l.b16 %v506
        %v546 = vunpack.c.l.b16 %v507
        %v547 = vunpack.c.l.b16 %v508
        %v548 = vunpack.c.l.b16 %v509
        %v549 = vunpack.c.l.b16 %v510
        %v550 = vunpack.c.l.b16 %v511
        %v551 = vunpack.c.l.b16 %v512
        %v552 = vunpack.c.l.b16 %v513
        %v553 = vunpack.c.l.b16 %v514
        %v554 = vunpack.c.l.b16 %v515
        %v555 = vunpack.c.l.b16 %v516
        %v556 = vunpack.c.l.b16 %v517
        %v557 = vunpack.c.l.b16 %v518
        %v558 = vunpack.c.l.b16 %v519
        %v559 = vpack.c.b16 %v544, %v543
        %v560 = vpack.c.b16 %v546, %v545
        %v561 = vpack.c.b16 %v548, %v547
        %v562 = vpack.c.b16 %v550, %v549
        %v563 = vpack.c.b16 %v552, %v551
        %v564 = vpack.c.b16 %v554, %v553
        %v565 = vpack.c.b16 %v556, %v555
        %v566 = vpack.c.b16 %v558, %v557
        %575 = vmatprep.subr.bf16.mxu0 0
        %576 = vmatpush1.bf16.msra.mxu0 %v559
        %577 = vmatprep.subr.bf16.mxu0 0
        %578 = vmatpush1.bf16.msra.mxu0 %v560
        %579 = vmatprep.subr.bf16.mxu0 0
        %580 = vmatpush1.bf16.msra.mxu0 %v561
        %581 = vmatprep.subr.bf16.mxu0 0
        %582 = vmatpush1.bf16.msra.mxu0 %v562
        %583 = vmatprep.subr.bf16.mxu0 0
        %584 = vmatpush1.bf16.msra.mxu0 %v563
        %585 = vmatprep.subr.bf16.mxu0 0
        %586 = vmatpush1.bf16.msra.mxu0 %v564
        %587 = vmatprep.subr.bf16.mxu0 0
        %588 = vmatpush1.bf16.msra.mxu0 %v565
        %589 = vmatprep.subr.bf16.mxu0 0
        %590 = vmatpush1.bf16.msra.mxu0 %v566
        %591 = vmatprep.subr.bf16.mxu0 0
        %592 = vmatpush1.bf16.msra.mxu0 0
        %593 = vmatprep.subr.bf16.mxu0 0
        %594 = vmatpush1.bf16.msra.mxu0 0
        %595 = vmatprep.subr.bf16.mxu0 0
        %596 = vmatpush1.bf16.msra.mxu0 0
        %597 = vmatprep.subr.bf16.mxu0 0
        %598 = vmatpush1.bf16.msra.mxu0 0
        %599 = vmatprep.subr.bf16.mxu0 0
        %600 = vmatpush1.bf16.msra.mxu0 0
        %601 = vmatprep.subr.bf16.mxu0 0
        %602 = vmatpush1.bf16.msra.mxu0 0
        %603 = vmatprep.subr.bf16.mxu0 0
        %604 = vmatpush1.bf16.msra.mxu0 0
        %605 = vmatprep.subr.bf16.mxu0 0
        %606 = vmatpush1.bf16.msra.mxu0 0
        %607 = vmatprep.mubr.bf16.mxu0 0
        %608 = vmatmul.mubr.bf16.gmra.mrb[0].mxu0 %v397
        %v609 = vpop.f32.mrb[0].mxu0
        %v610 = vadd.f32 %v525, %v609
        %v611 = vpop.f32.mrb[0].mxu0
        %v612 = vpop.f32.mrb[0].mxu0
        %v613 = vpop.f32.mrb[0].mxu0
        %614 = vdwg.mxu0
        %v615 = vlaneseq
        %v616 = vshrl.u32 %v615, 7
        %v617 = vsub.s32 0, %v616
        %v618 = vrot.slane %v499, %v617
        %v619 = vmul.f32 %v610, %v618
        %v620 = vpack.c.bf16 %v619, %v619
        %v621 = vld [vmem:[#allocation8] sm:$0xf]
        %v622 = vld [vmem:[#allocation8 + $0x4] sm:$0xf]
        %v623 = vld [vmem:[#allocation8 + $0x8] sm:$0xf]
        %v624 = vld [vmem:[#allocation8 + $0xc] sm:$0xf]
        %v625 = vld [vmem:[#allocation8 + $0x10] sm:$0xf]
        %v626 = vld [vmem:[#allocation8 + $0x14] sm:$0xf]
        %v627 = vld [vmem:[#allocation8 + $0x18] sm:$0xf]
        %v628 = vld [vmem:[#allocation8 + $0x1c] sm:$0xf]
        %v629 = vld [vmem:[#allocation8 + $0x20] sm:$0xf]
        %v630 = vld [vmem:[#allocation8 + $0x24] sm:$0xf]
        %v631 = vld [vmem:[#allocation8 + $0x28] sm:$0xf]
        %v632 = vld [vmem:[#allocation8 + $0x2c] sm:$0xf]
        %v633 = vld [vmem:[#allocation8 + $0x30] sm:$0xf]
        %v634 = vld [vmem:[#allocation8 + $0x34] sm:$0xf]
        %v635 = vld [vmem:[#allocation8 + $0x38] sm:$0xf]
        %v636 = vld [vmem:[#allocation8 + $0x3c] sm:$0xf]
        %v637 = vld [vmem:[%s7] sm:$0x1]
        %v639 = vlaneseq
        %v640 = vshrl.u32 %v639, 7
        %v641 = vsub.s32 0, %v640
        %v642 = vrot.slane %v637, %v641
        %v660 = vunpack.c.l.b16 %v621
        %v661 = vunpack.c.l.b16 %v622
        %v662 = vunpack.c.l.b16 %v623
        %v663 = vunpack.c.l.b16 %v624
        %v664 = vunpack.c.l.b16 %v625
        %v665 = vunpack.c.l.b16 %v626
        %v666 = vunpack.c.l.b16 %v627
        %v667 = vunpack.c.l.b16 %v628
        %v668 = vunpack.c.l.b16 %v629
        %v669 = vunpack.c.l.b16 %v630
        %v670 = vunpack.c.l.b16 %v631
        %v671 = vunpack.c.l.b16 %v632
        %v672 = vunpack.c.l.b16 %v633
        %v673 = vunpack.c.l.b16 %v634
        %v674 = vunpack.c.l.b16 %v635
        %v675 = vunpack.c.l.b16 %v636
        %v676 = vpack.c.b16 %v661, %v660
        %v677 = vpack.c.b16 %v663, %v662
        %v678 = vpack.c.b16 %v665, %v664
        %v679 = vpack.c.b16 %v667, %v666
        %v680 = vpack.c.b16 %v669, %v668
        %v681 = vpack.c.b16 %v671, %v670
        %v682 = vpack.c.b16 %v673, %v672
        %v683 = vpack.c.b16 %v675, %v674
        %692 = vmatprep.subr.bf16.mxu0 0
        %693 = vmatpush1.bf16.msra.mxu0 %v676
        %694 = vmatprep.subr.bf16.mxu0 0
        %695 = vmatpush1.bf16.msra.mxu0 %v677
        %696 = vmatprep.subr.bf16.mxu0 0
        %697 = vmatpush1.bf16.msra.mxu0 %v678
        %698 = vmatprep.subr.bf16.mxu0 0
        %699 = vmatpush1.bf16.msra.mxu0 %v679
        %700 = vmatprep.subr.bf16.mxu0 0
        %701 = vmatpush1.bf16.msra.mxu0 %v680
        %702 = vmatprep.subr.bf16.mxu0 0
        %703 = vmatpush1.bf16.msra.mxu0 %v681
        %704 = vmatprep.subr.bf16.mxu0 0
        %705 = vmatpush1.bf16.msra.mxu0 %v682
        %706 = vmatprep.subr.bf16.mxu0 0
        %707 = vmatpush1.bf16.msra.mxu0 %v683
        %708 = vmatprep.subr.bf16.mxu0 0
        %709 = vmatpush1.bf16.msra.mxu0 0
        %710 = vmatprep.subr.bf16.mxu0 0
        %711 = vmatpush1.bf16.msra.mxu0 0
        %712 = vmatprep.subr.bf16.mxu0 0
        %713 = vmatpush1.bf16.msra.mxu0 0
        %714 = vmatprep.subr.bf16.mxu0 0
        %715 = vmatpush1.bf16.msra.mxu0 0
        %716 = vmatprep.subr.bf16.mxu0 0
        %717 = vmatpush1.bf16.msra.mxu0 0
        %718 = vmatprep.subr.bf16.mxu0 0
        %719 = vmatpush1.bf16.msra.mxu0 0
        %720 = vmatprep.subr.bf16.mxu0 0
        %721 = vmatpush1.bf16.msra.mxu0 0
        %722 = vmatprep.subr.bf16.mxu0 0
        %723 = vmatpush1.bf16.msra.mxu0 0
        %724 = vmatprep.mubr.bf16.mxu0 0
        %725 = vmatmul.mubr.bf16.gmra.mrb[0].mxu0 %v620
        %v726 = vpop.f32.mrb[0].mxu0
        %v727 = vadd.f32 %v642, %v726
        %v728 = vpop.f32.mrb[0].mxu0
        %v729 = vpop.f32.mrb[0].mxu0
        %v730 = vpop.f32.mrb[0].mxu0
        %731 = vdwg.mxu0
        %732 = vst [vmem:[%s392] sm:$0xff] %v727
        %s733 = sand.u32 %s229, 1
        %s734 = scalar_lea.sflag [#allocation4], %s733
        %s735 = sand.u32 %s229, 1
        %s736 = smul.addr %s735, 8
        %s737 = scalar_lea.vmem [#allocation10], %s736
        // Predicated region
        $region69: #{tpu_custom_call.1} parent=51 // pred_check
          %p738 = pneg %p239
        $region70: #{tpu_custom_call.1} parent=51 // pred_check_branch
          %740 = sbr.rel (%p738) target = $region72
        $region71: #{tpu_custom_call.1} parent=51 // pred_region
          %s742 = ssub.s32 128, 128
          %743 = vsyncadd %s734, %s742
          %s744 = sadd.s32 %s32, %s31
          %s745 = smul.addr %s744, 128
          %s746 = scalar_lea.hbm %s8, %s745
          %s748 = sshll.u32 %s737, 4
          %s749 = int_to_ptr.vmem [resolvable:$true] %s748
          %751 = dma.vmem_to_hbm [thread:$0]  %s749, 128, %s746, %s734
        $region72: #{tpu_custom_call.1} parent=51 // pred_fallthru
          _
      $region52: #{tpu_custom_call.1} parent=5 // pred_fallthru
        _
      %p752 = scmp.le.s32.totalorder 2, %s22
      // Predicated region
      $region73: #{tpu_custom_call.1} parent=5 // pred_check
        %p753 = pneg %p752
      $region74: #{tpu_custom_call.1} parent=5 // pred_check_branch
        %755 = sbr.rel (%p753) target = $region76
      $region75: #{tpu_custom_call.1} parent=5 // pred_region
        %s756 = ssub.s32 %s22, 2
        // Predicated region
        $region77: #{tpu_custom_call.1} parent=75 // pred_check
          %p757 = pneg %p245
        $region78: #{tpu_custom_call.1} parent=75 // pred_check_branch
          %759 = sbr.rel (%p757) target = $region80
        $region79: #{tpu_custom_call.1} parent=75 // pred_region
          %s760 = sand.u32 %s230, 1
          %s761 = scalar_lea.sflag [#allocation4], %s760
          %s762 = sand.u32 %s230, 1
          %s763 = smul.addr %s762, 8
          %s764 = scalar_lea.vmem [#allocation10], %s763
          %765 = dma.done %s761, 128
        $region80: #{tpu_custom_call.1} parent=75 // pred_fallthru
          _
      $region76: #{tpu_custom_call.1} parent=5 // pred_fallthru
        _
    $region6: #{tpu_custom_call.1} parent=1 // loop_footer
      %s26 = sadd.s32 1, %s22
    $region7: #{tpu_custom_call.1} parent=1 // loop_footer_branch
      %21 = sbr.rel target = $region3
    $region8: #{tpu_custom_call.1} parent=1 // loop_exit
      _
    %766 = vsyncpa [#allocation3], 1
    %s767 = scalar_lea.sflag [#allocation3], 1
    %768 = vsyncpa %s767, 1
    %769 = vsyncpa [#allocation6], 1
    %770 = vsyncpa [#allocation9], 1
    %771 = vsyncpa [#allocation4], 1
    %s772 = scalar_lea.sflag [#allocation4], 1
    %773 = vsyncpa %s772, 1

</llo_original>
